<compile_context>
chip_gen: v5e
topology: v5e:2x2
jax: 0.10.0
libtpu: 0.0.40
codegen_flags: <defaults>
</compile_context>

<pallas_src>
import functools
import numpy as np
import jax
import jax.numpy as jnp
from jax import lax
from jax.experimental import pallas as pl
from jax.experimental.pallas import tpu as pltpu


def _vmem():
    return pl.BlockSpec(memory_space=pltpu.MemorySpace.VMEM)


# ---------------------------------------------------------------------------
# Single fused Pallas kernel:
#   folded conv3d#1 -> conv3d#2 -> 1x1-conv-as-FC -> fc1 -> fc2 -> fc3
# ---------------------------------------------------------------------------
def _fused_kernel(p1_ref, w1_ref, b1_ref, w2_ref, b2_ref,
                  c2dw_ref, c2db_ref, fc1w_ref, fc1b_ref,
                  fc2w_ref, fc2b_ref, fc3w_ref, fc3b_ref,
                  o_ref,
                  a1_s, a2_s, h2_s, feat_s, *, B, Do2):
    # --- Stage 1: folded conv3d#1 as ONE matmul ------------------------------
    #   p1 : (9*B, C*9)   rows (yx, b),  cols (c, kh, kw)
    #   w1 : (C*9, Do*8)  cols (d, o)
    a1 = jnp.dot(p1_ref[...], w1_ref[...], preferred_element_type=jnp.float32)
    a1_s[...] = jnp.maximum(a1 + b1_ref[...], 0.0)          # relu(conv1)

    # --- Relayout (yx,b) x (d,o) -> (d2,b) x (yx,kd,o) -----------------------
    # 72 static VMEM block copies of (B, 24); the sliding spectral window of
    # conv2 (d = d2 + kd) maps to a contiguous 24-column source slice.
    for yx in range(9):
        for d2 in range(Do2):
            a2_s[d2 * B:(d2 + 1) * B, yx * 24:(yx + 1) * 24] = (
                a1_s[yx * B:(yx + 1) * B, d2 * 8:d2 * 8 + 24])

    # --- Stage 2: conv3d#2 as ONE dense (216,16) matmul (no kron weight) -----
    h2 = jnp.dot(a2_s[...], w2_ref[...], preferred_element_type=jnp.float32)
    h2_s[...] = jnp.maximum(h2 + b2_ref[...], 0.0)           # relu(conv2), rows (d2, b)

    # --- Relayout (d2,b) x (j) -> (b) x (d2,j): 8 static copies ---------------
    for d2 in range(Do2):
        feat_s[:, d2 * 16:(d2 + 1) * 16] = h2_s[d2 * B:(d2 + 1) * B, :]

    # --- FC tail, fully VMEM resident -----------------------------------------
    def fc(h, w_ref, b_ref, relu):
        acc = jnp.dot(h, w_ref[...], preferred_element_type=jnp.float32) + b_ref[...]
        return jnp.maximum(acc, 0.0) if relu else acc

    h = fc(feat_s[...], c2dw_ref, c2db_ref, True)            # 1x1 conv2d as FC
    h = fc(h, fc1w_ref, fc1b_ref, True)                      # fc1
    h = fc(h, fc2w_ref, fc2b_ref, True)                      # fc2
    o_ref[...] = fc(h, fc3w_ref, fc3b_ref, False)            # fc3 (no relu)


def _fused_call(p1, pp, b, do, do2, out_dim):
    kern = functools.partial(_fused_kernel, B=b, Do2=do2)
    args = (p1, pp['w1k'], pp['b1row'], pp['w2mat'], pp['b2row'],
            pp['c2d_w'], pp['c2d_b'], pp['fc1_w'], pp['fc1_b'],
            pp['fc2_w'], pp['fc2_b'], pp['fc3_w'], pp['fc3_b'])
    return pl.pallas_call(
        kern,
        out_shape=jax.ShapeDtypeStruct((b, out_dim), jnp.float32),
        in_specs=[_vmem()] * len(args),
        out_specs=_vmem(),
        scratch_shapes=[
            pltpu.VMEM((9 * b, do * 8), jnp.float32),        # a1_s : relu(conv1)
            pltpu.VMEM((do2 * b, 216), jnp.float32),         # a2_s : conv2 LHS
            pltpu.VMEM((do2 * b, 16), jnp.float32),          # h2_s : relu(conv2)
            pltpu.VMEM((b, do2 * 16), jnp.float32),          # feat_s
        ],
    )(*args)


# ---------------------------------------------------------------------------
# Host-side plumbing
# ---------------------------------------------------------------------------
def center_img(x, size):
    # TODO(synk): center_img source not provided; assumed center spatial crop.
    h, w = x.shape[2], x.shape[3]
    h0, w0 = (h - size) // 2, (w - size) // 2
    return x[:, :, h0:h0 + size, w0:w0 + size]


def prepare_params(params, c, rand_sel):
    """One-time weight re-layout + folding of the fixed channel recombination
    into conv3d#1's weights.  Runs once, outside the jitted forward.
    NOTE: rand_list is a fixed (non-trainable) parameter of the module; if it
    ever changes, prepare_params must be re-run.
    """
    do, do2 = c - 2, c - 4
    rs = np.asarray(rand_sel)                                # (100, c) int
    assert rs.shape == (100, c)
    w1 = np.asarray(params['c3d1_w'], np.float32)            # (8, 100, 3, 3, 3)
    b1 = np.asarray(params['c3d1_b'], np.float32)            # (8,)
    w2 = np.asarray(params['c3d2_w'], np.float32)            # (16, 8, 3, 3, 3)
    b2 = np.asarray(params['c3d2_b'], np.float32)            # (16,)

    # Fold gather + group sum:
    #   W_eff[o, d, ch, kh, kw] = sum_{g, kd : rand_sel[g, d+kd] == ch} w1[o, g, kd, kh, kw]
    onehot = (rs[:, :, None] == np.arange(c)[None, None, :]).astype(np.float32)  # (100, c, c)
    w_eff = np.zeros((8, do, c, 3, 3), np.float32)
    for d in range(do):
        for kd in range(3):
            w_eff[:, d] += np.einsum('oghw,gc->ochw', w1[:, :, kd], onehot[:, d + kd, :])

    w1k = w_eff.transpose(2, 3, 4, 1, 0).reshape(c * 9, do * 8)   # rows (c,kh,kw), cols (d,o)
    b1row = np.tile(b1, do).reshape(1, do * 8)
    w2mat = w2.transpose(3, 4, 2, 1, 0).reshape(9 * 3 * 8, 16)    # rows (kh,kw,kd,i), cols j
    b2row = b2.reshape(1, 16)

    def f32(a, shape=None):
        a = np.asarray(a, np.float32)
        return jnp.asarray(a.reshape(shape) if shape is not None else a)

    return dict(
        w1k=jnp.asarray(w1k), b1row=jnp.asarray(b1row),
        w2mat=jnp.asarray(w2mat), b2row=jnp.asarray(b2row),
        c2d_w=f32(params['c2d_w']), c2d_b=f32(params['c2d_b'], (1, -1)),
        fc1_w=f32(params['fc1_w']), fc1_b=f32(params['fc1_b'], (1, -1)),
        fc2_w=f32(params['fc2_w']), fc2_b=f32(params['fc2_b'], (1, -1)),
        fc3_w=f32(params['fc3_w']), fc3_b=f32(params['fc3_b'], (1, -1)),
    )


# TODO(synk): HybridSN source not bundled; a HybridSN-style backbone
# (Conv3d(100->8,k3) -> ReLU -> Conv3d(8->16,k3) -> ReLU -> flatten(spectral,channel)
#  -> 1x1-conv-as-FC(64) -> ReLU -> fc1(256) -> fc2(128) -> fc3(out)) is assumed,
# identical to the previous submission, so results are self-consistent.
@jax.jit
def randcomb_forward(x, pp):
    b = x.shape[0]
    cube = center_img(x, 5)                                  # (b, C, 5, 5)
    c = cube.shape[1]
    do, do2 = c - 2, c - 4
    # Tiny im2col of the raw cube (the only XLA glue left, ~8 KB at b=2):
    # P1[(yx, b), (c, kh, kw)] = cube[b, c, y+kh, x+kw]
    patches = jnp.stack([cube[:, :, y:y + 3, xx:xx + 3]
                         for y in range(3) for xx in range(3)], axis=0)   # (9, b, c, 3, 3)
    p1 = patches.reshape(9 * b, c * 9)
    out = _fused_call(p1, pp, b, do, do2, pp['fc3_b'].shape[1])
    return [out]


# ---------------------------------------------------------------------------
# Pure-JAX reference of the same (assumed) backbone, for validation
# ---------------------------------------------------------------------------
def reference_forward(x, params, rand_sel):
    cube = center_img(x, 5)
    b, c = cube.shape[0], cube.shape[1]
    z = jnp.take(cube, jnp.asarray(rand_sel.reshape(-1)), axis=1).reshape(b, -1, c, 5, 5)

    def conv3d(h, w, bias):
        dn = lax.conv_dimension_numbers(h.shape, w.shape, ('NCDHW', 'OIDHW', 'NCDHW'))
        h = lax.conv_general_dilated(h, w, (1, 1, 1), 'VALID', dimension_numbers=dn,
                                     precision=lax.Precision.HIGHEST)
        return jnp.maximum(h + bias.reshape(1, -1, 1, 1, 1), 0.0)

    h = conv3d(z, params['c3d1_w'], params['c3d1_b'])        # (b, 8, c-2, 3, 3)
    h = conv3d(h, params['c3d2_w'], params['c3d2_b'])        # (b, 16, c-4, 1, 1)
    feat = h.reshape(b, 16, -1).transpose(0, 2, 1).reshape(b, -1)   # (b, (c-4)*16), order (d2, j)

    def fc(v, w, bias, relu=True):
        v = jnp.dot(v, w, precision=lax.Precision.HIGHEST) + bias
        return jnp.maximum(v, 0.0) if relu else v

    h = fc(feat, params['c2d_w'], params['c2d_b'])
    h = fc(h, params['fc1_w'], params['fc1_b'])
    h = fc(h, params['fc2_w'], params['fc2_b'])
    return fc(h, params['fc3_w'], params['fc3_b'], relu=False)


if __name__ == "__main__":
    B, C, H, W = 2, 12, 16, 16     # input_channels = 12 (>= 10 so 10*C >= 100 groups exist)
    OUT = 6

    key = jax.random.PRNGKey(0)
    keys = jax.random.split(key, 16)
    x = jax.random.normal(keys[0], (B, C, H, W), jnp.float32)

    # Deterministic rand_list (the module stores it as a fixed non-trainable
    # parameter): first row identity, remaining rows permutations (N = 10*C).
    rng = np.random.RandomState(0)
    rows = [np.arange(C)]
    for _ in range(C * 10 - 1):
        rows.append(rng.permutation(C))
    rand_list = np.stack(rows, 0).astype(np.int32)           # (10*C, C)
    rand_sel = rand_list[:100]                               # only the first 100 rows feed the backbone

    def init(k, shape, scale=0.1):
        return scale * jax.random.normal(k, shape, jnp.float32)

    params = dict(
        c3d1_w=init(keys[1], (8, 100, 3, 3, 3)),
        c3d1_b=init(keys[2], (8,)),
        c3d2_w=init(keys[3], (16, 8, 3, 3, 3)),
        c3d2_b=init(keys[4], (16,)),
        c2d_w=init(keys[5], (16 * (C - 4), 64)),
        c2d_b=init(keys[6], (64,)),
        fc1_w=init(keys[7], (64, 256)),
        fc1_b=init(keys[8], (256,)),
        fc2_w=init(keys[9], (256, 128)),
        fc2_b=init(keys[10], (128,)),
        fc3_w=init(keys[11], (128, OUT)),
        fc3_b=init(keys[12], (OUT,)),
    )
    # Note: out_fc / fuse_para / GAP1D from __init__ are unused in forward().

    pp = prepare_params(params, C, rand_sel)

    out = randcomb_forward(x, pp)
    jax.block_until_ready(out[0])
    assert out[0].shape == (B, OUT)
    assert bool(jnp.all(jnp.isfinite(out[0])))

    # Validate the folded / fused kernel against a pure-JAX reference of the
    # same backbone (loose tolerance covers MXU vs XLA precision differences).
    ref = reference_forward(x, params, rand_sel)
    np.testing.assert_allclose(np.asarray(out[0]), np.asarray(ref), rtol=5e-2, atol=1e-2)

    print("KERNEL_OK")
</pallas_src>

<mosaic_0001>
module attributes {stable_mosaic.version = 11 : i64} {
  func.func @_fused_kernel(%arg0: memref<18x108xf32, #tpu.memory_space<vmem>>, %arg1: memref<108x80xf32, #tpu.memory_space<vmem>>, %arg2: memref<1x80xf32, #tpu.memory_space<vmem>>, %arg3: memref<216x16xf32, #tpu.memory_space<vmem>>, %arg4: memref<1x16xf32, #tpu.memory_space<vmem>>, %arg5: memref<128x64xf32, #tpu.memory_space<vmem>>, %arg6: memref<1x64xf32, #tpu.memory_space<vmem>>, %arg7: memref<64x256xf32, #tpu.memory_space<vmem>>, %arg8: memref<1x256xf32, #tpu.memory_space<vmem>>, %arg9: memref<256x128xf32, #tpu.memory_space<vmem>>, %arg10: memref<1x128xf32, #tpu.memory_space<vmem>>, %arg11: memref<128x6xf32, #tpu.memory_space<vmem>>, %arg12: memref<1x6xf32, #tpu.memory_space<vmem>>, %arg13: memref<2x6xf32, #tpu.memory_space<vmem>>, %arg14: memref<18x80xf32, #tpu.memory_space<vmem>>, %arg15: memref<16x216xf32, #tpu.memory_space<vmem>>, %arg16: memref<16x16xf32, #tpu.memory_space<vmem>>, %arg17: memref<2x128xf32, #tpu.memory_space<vmem>>) attributes {dimension_semantics = [], scalar_prefetch = 0 : i64, scratch_operands = 4 : i64, tpu.core_type = #tpu.core_type<tc>} {
    %c0 = arith.constant 0 : index
    %c0_0 = arith.constant 0 : index
    %0 = vector.load %arg0[%c0, %c0_0] : memref<18x108xf32, #tpu.memory_space<vmem>>, vector<18x108xf32>
    %c0_1 = arith.constant 0 : index
    %c0_2 = arith.constant 0 : index
    %1 = vector.load %arg1[%c0_1, %c0_2] : memref<108x80xf32, #tpu.memory_space<vmem>>, vector<108x80xf32>
    %cst = arith.constant dense<0.000000e+00> : vector<18x80xf32>
    %2 = tpu.matmul %0, %1, %cst {dimension_numbers = #tpu.dot_dimension_numbers<[1], [0], [0], [1], [0, 0, 1, 1], [], []>} : vector<18x108xf32>, vector<108x80xf32>, vector<18x80xf32> -> vector<18x80xf32>
    %c0_3 = arith.constant 0 : index
    %c0_4 = arith.constant 0 : index
    %3 = vector.load %arg2[%c0_3, %c0_4] : memref<1x80xf32, #tpu.memory_space<vmem>>, vector<1x80xf32>
    %4 = vector.broadcast %3 : vector<1x80xf32> to vector<18x80xf32>
    %5 = arith.addf %2, %4 : vector<18x80xf32>
    %cst_5 = arith.constant 0.000000e+00 : f32
    %6 = vector.broadcast %cst_5 : f32 to vector<18x80xf32>
    %7 = arith.maximumf %5, %6 : vector<18x80xf32>
    %c0_6 = arith.constant 0 : index
    %c0_7 = arith.constant 0 : index
    %8 = vector.load %arg14[%c0_6, %c0_7] : memref<18x80xf32, #tpu.memory_space<vmem>>, vector<18x80xf32>
    tpu.vector_store %arg14[%c0_6, %c0_7], %7 {strides = array<i32>} : memref<18x80xf32, #tpu.memory_space<vmem>>, vector<18x80xf32>,
    %c0_8 = arith.constant 0 : index
    %c0_9 = arith.constant 0 : index
    %9 = vector.load %arg14[%c0_8, %c0_9] : memref<18x80xf32, #tpu.memory_space<vmem>>, vector<2x24xf32>
    %c0_10 = arith.constant 0 : index
    %c0_11 = arith.constant 0 : index
    %10 = vector.load %arg15[%c0_10, %c0_11] : memref<16x216xf32, #tpu.memory_space<vmem>>, vector<2x24xf32>
    tpu.vector_store %arg15[%c0_10, %c0_11], %9 {strides = array<i32>} : memref<16x216xf32, #tpu.memory_space<vmem>>, vector<2x24xf32>,
    %c0_12 = arith.constant 0 : index
    %c8 = arith.constant 8 : index
    %11 = vector.load %arg14[%c0_12, %c8] : memref<18x80xf32, #tpu.memory_space<vmem>>, vector<2x24xf32>
    %c2 = arith.constant 2 : index
    %c0_13 = arith.constant 0 : index
    %12 = vector.load %arg15[%c2, %c0_13] : memref<16x216xf32, #tpu.memory_space<vmem>>, vector<2x24xf32>
    tpu.vector_store %arg15[%c2, %c0_13], %11 {strides = array<i32>} : memref<16x216xf32, #tpu.memory_space<vmem>>, vector<2x24xf32>,
    %c0_14 = arith.constant 0 : index
    %c16 = arith.constant 16 : index
    %13 = vector.load %arg14[%c0_14, %c16] : memref<18x80xf32, #tpu.memory_space<vmem>>, vector<2x24xf32>
    %c4 = arith.constant 4 : index
    %c0_15 = arith.constant 0 : index
    %14 = vector.load %arg15[%c4, %c0_15] : memref<16x216xf32, #tpu.memory_space<vmem>>, vector<2x24xf32>
    tpu.vector_store %arg15[%c4, %c0_15], %13 {strides = array<i32>} : memref<16x216xf32, #tpu.memory_space<vmem>>, vector<2x24xf32>,
    %c0_16 = arith.constant 0 : index
    %c24 = arith.constant 24 : index
    %15 = vector.load %arg14[%c0_16, %c24] : memref<18x80xf32, #tpu.memory_space<vmem>>, vector<2x24xf32>
    %c6 = arith.constant 6 : index
    %c0_17 = arith.constant 0 : index
    %16 = vector.load %arg15[%c6, %c0_17] : memref<16x216xf32, #tpu.memory_space<vmem>>, vector<2x24xf32>
    tpu.vector_store %arg15[%c6, %c0_17], %15 {strides = array<i32>} : memref<16x216xf32, #tpu.memory_space<vmem>>, vector<2x24xf32>,
    %c0_18 = arith.constant 0 : index
    %c32 = arith.constant 32 : index
    %17 = vector.load %arg14[%c0_18, %c32] : memref<18x80xf32, #tpu.memory_space<vmem>>, vector<2x24xf32>
    %c8_19 = arith.constant 8 : index
    %c0_20 = arith.constant 0 : index
    %18 = vector.load %arg15[%c8_19, %c0_20] : memref<16x216xf32, #tpu.memory_space<vmem>>, vector<2x24xf32>
    tpu.vector_store %arg15[%c8_19, %c0_20], %17 {strides = array<i32>} : memref<16x216xf32, #tpu.memory_space<vmem>>, vector<2x24xf32>,
    %c0_21 = arith.constant 0 : index
    %c40 = arith.constant 40 : index
    %19 = vector.load %arg14[%c0_21, %c40] : memref<18x80xf32, #tpu.memory_space<vmem>>, vector<2x24xf32>
    %c10 = arith.constant 10 : index
    %c0_22 = arith.constant 0 : index
    %20 = vector.load %arg15[%c10, %c0_22] : memref<16x216xf32, #tpu.memory_space<vmem>>, vector<2x24xf32>
    tpu.vector_store %arg15[%c10, %c0_22], %19 {strides = array<i32>} : memref<16x216xf32, #tpu.memory_space<vmem>>, vector<2x24xf32>,
    %c0_23 = arith.constant 0 : index
    %c48 = arith.constant 48 : index
    %21 = vector.load %arg14[%c0_23, %c48] : memref<18x80xf32, #tpu.memory_space<vmem>>, vector<2x24xf32>
    %c12 = arith.constant 12 : index
    %c0_24 = arith.constant 0 : index
    %22 = vector.load %arg15[%c12, %c0_24] : memref<16x216xf32, #tpu.memory_space<vmem>>, vector<2x24xf32>
    tpu.vector_store %arg15[%c12, %c0_24], %21 {strides = array<i32>} : memref<16x216xf32, #tpu.memory_space<vmem>>, vector<2x24xf32>,
    %c0_25 = arith.constant 0 : index
    %c56 = arith.constant 56 : index
    %23 = vector.load %arg14[%c0_25, %c56] : memref<18x80xf32, #tpu.memory_space<vmem>>, vector<2x24xf32>
    %c14 = arith.constant 14 : index
    %c0_26 = arith.constant 0 : index
    %24 = vector.load %arg15[%c14, %c0_26] : memref<16x216xf32, #tpu.memory_space<vmem>>, vector<2x24xf32>
    tpu.vector_store %arg15[%c14, %c0_26], %23 {strides = array<i32>} : memref<16x216xf32, #tpu.memory_space<vmem>>, vector<2x24xf32>,
    %c2_27 = arith.constant 2 : index
    %c0_28 = arith.constant 0 : index
    %25 = vector.load %arg14[%c2_27, %c0_28] : memref<18x80xf32, #tpu.memory_space<vmem>>, vector<2x24xf32>
    %c0_29 = arith.constant 0 : index
    %c24_30 = arith.constant 24 : index
    %26 = vector.load %arg15[%c0_29, %c24_30] : memref<16x216xf32, #tpu.memory_space<vmem>>, vector<2x24xf32>
    tpu.vector_store %arg15[%c0_29, %c24_30], %25 {strides = array<i32>} : memref<16x216xf32, #tpu.memory_space<vmem>>, vector<2x24xf32>,
    %c2_31 = arith.constant 2 : index
    %c8_32 = arith.constant 8 : index
    %27 = vector.load %arg14[%c2_31, %c8_32] : memref<18x80xf32, #tpu.memory_space<vmem>>, vector<2x24xf32>
    %c2_33 = arith.constant 2 : index
    %c24_34 = arith.constant 24 : index
    %28 = vector.load %arg15[%c2_33, %c24_34] : memref<16x216xf32, #tpu.memory_space<vmem>>, vector<2x24xf32>
    tpu.vector_store %arg15[%c2_33, %c24_34], %27 {strides = array<i32>} : memref<16x216xf32, #tpu.memory_space<vmem>>, vector<2x24xf32>,
    %c2_35 = arith.constant 2 : index
    %c16_36 = arith.constant 16 : index
    %29 = vector.load %arg14[%c2_35, %c16_36] : memref<18x80xf32, #tpu.memory_space<vmem>>, vector<2x24xf32>
    %c4_37 = arith.constant 4 : index
    %c24_38 = arith.constant 24 : index
    %30 = vector.load %arg15[%c4_37, %c24_38] : memref<16x216xf32, #tpu.memory_space<vmem>>, vector<2x24xf32>
    tpu.vector_store %arg15[%c4_37, %c24_38], %29 {strides = array<i32>} : memref<16x216xf32, #tpu.memory_space<vmem>>, vector<2x24xf32>,
    %c2_39 = arith.constant 2 : index
    %c24_40 = arith.constant 24 : index
    %31 = vector.load %arg14[%c2_39, %c24_40] : memref<18x80xf32, #tpu.memory_space<vmem>>, vector<2x24xf32>
    %c6_41 = arith.constant 6 : index
    %c24_42 = arith.constant 24 : index
    %32 = vector.load %arg15[%c6_41, %c24_42] : memref<16x216xf32, #tpu.memory_space<vmem>>, vector<2x24xf32>
    tpu.vector_store %arg15[%c6_41, %c24_42], %31 {strides = array<i32>} : memref<16x216xf32, #tpu.memory_space<vmem>>, vector<2x24xf32>,
    %c2_43 = arith.constant 2 : index
    %c32_44 = arith.constant 32 : index
    %33 = vector.load %arg14[%c2_43, %c32_44] : memref<18x80xf32, #tpu.memory_space<vmem>>, vector<2x24xf32>
    %c8_45 = arith.constant 8 : index
    %c24_46 = arith.constant 24 : index
    %34 = vector.load %arg15[%c8_45, %c24_46] : memref<16x216xf32, #tpu.memory_space<vmem>>, vector<2x24xf32>
    tpu.vector_store %arg15[%c8_45, %c24_46], %33 {strides = array<i32>} : memref<16x216xf32, #tpu.memory_space<vmem>>, vector<2x24xf32>,
    %c2_47 = arith.constant 2 : index
    %c40_48 = arith.constant 40 : index
    %35 = vector.load %arg14[%c2_47, %c40_48] : memref<18x80xf32, #tpu.memory_space<vmem>>, vector<2x24xf32>
    %c10_49 = arith.constant 10 : index
    %c24_50 = arith.constant 24 : index
    %36 = vector.load %arg15[%c10_49, %c24_50] : memref<16x216xf32, #tpu.memory_space<vmem>>, vector<2x24xf32>
    tpu.vector_store %arg15[%c10_49, %c24_50], %35 {strides = array<i32>} : memref<16x216xf32, #tpu.memory_space<vmem>>, vector<2x24xf32>,
    %c2_51 = arith.constant 2 : index
    %c48_52 = arith.constant 48 : index
    %37 = vector.load %arg14[%c2_51, %c48_52] : memref<18x80xf32, #tpu.memory_space<vmem>>, vector<2x24xf32>
    %c12_53 = arith.constant 12 : index
    %c24_54 = arith.constant 24 : index
    %38 = vector.load %arg15[%c12_53, %c24_54] : memref<16x216xf32, #tpu.memory_space<vmem>>, vector<2x24xf32>
    tpu.vector_store %arg15[%c12_53, %c24_54], %37 {strides = array<i32>} : memref<16x216xf32, #tpu.memory_space<vmem>>, vector<2x24xf32>,
    %c2_55 = arith.constant 2 : index
    %c56_56 = arith.constant 56 : index
    %39 = vector.load %arg14[%c2_55, %c56_56] : memref<18x80xf32, #tpu.memory_space<vmem>>, vector<2x24xf32>
    %c14_57 = arith.constant 14 : index
    %c24_58 = arith.constant 24 : index
    %40 = vector.load %arg15[%c14_57, %c24_58] : memref<16x216xf32, #tpu.memory_space<vmem>>, vector<2x24xf32>
    tpu.vector_store %arg15[%c14_57, %c24_58], %39 {strides = array<i32>} : memref<16x216xf32, #tpu.memory_space<vmem>>, vector<2x24xf32>,
    %c4_59 = arith.constant 4 : index
    %c0_60 = arith.constant 0 : index
    %41 = vector.load %arg14[%c4_59, %c0_60] : memref<18x80xf32, #tpu.memory_space<vmem>>, vector<2x24xf32>
    %c0_61 = arith.constant 0 : index
    %c48_62 = arith.constant 48 : index
    %42 = vector.load %arg15[%c0_61, %c48_62] : memref<16x216xf32, #tpu.memory_space<vmem>>, vector<2x24xf32>
    tpu.vector_store %arg15[%c0_61, %c48_62], %41 {strides = array<i32>} : memref<16x216xf32, #tpu.memory_space<vmem>>, vector<2x24xf32>,
    %c4_63 = arith.constant 4 : index
    %c8_64 = arith.constant 8 : index
    %43 = vector.load %arg14[%c4_63, %c8_64] : memref<18x80xf32, #tpu.memory_space<vmem>>, vector<2x24xf32>
    %c2_65 = arith.constant 2 : index
    %c48_66 = arith.constant 48 : index
    %44 = vector.load %arg15[%c2_65, %c48_66] : memref<16x216xf32, #tpu.memory_space<vmem>>, vector<2x24xf32>
    tpu.vector_store %arg15[%c2_65, %c48_66], %43 {strides = array<i32>} : memref<16x216xf32, #tpu.memory_space<vmem>>, vector<2x24xf32>,
    %c4_67 = arith.constant 4 : index
    %c16_68 = arith.constant 16 : index
    %45 = vector.load %arg14[%c4_67, %c16_68] : memref<18x80xf32, #tpu.memory_space<vmem>>, vector<2x24xf32>
    %c4_69 = arith.constant 4 : index
    %c48_70 = arith.constant 48 : index
    %46 = vector.load %arg15[%c4_69, %c48_70] : memref<16x216xf32, #tpu.memory_space<vmem>>, vector<2x24xf32>
    tpu.vector_store %arg15[%c4_69, %c48_70], %45 {strides = array<i32>} : memref<16x216xf32, #tpu.memory_space<vmem>>, vector<2x24xf32>,
    %c4_71 = arith.constant 4 : index
    %c24_72 = arith.constant 24 : index
    %47 = vector.load %arg14[%c4_71, %c24_72] : memref<18x80xf32, #tpu.memory_space<vmem>>, vector<2x24xf32>
    %c6_73 = arith.constant 6 : index
    %c48_74 = arith.constant 48 : index
    %48 = vector.load %arg15[%c6_73, %c48_74] : memref<16x216xf32, #tpu.memory_space<vmem>>, vector<2x24xf32>
    tpu.vector_store %arg15[%c6_73, %c48_74], %47 {strides = array<i32>} : memref<16x216xf32, #tpu.memory_space<vmem>>, vector<2x24xf32>,
    %c4_75 = arith.constant 4 : index
    %c32_76 = arith.constant 32 : index
    %49 = vector.load %arg14[%c4_75, %c32_76] : memref<18x80xf32, #tpu.memory_space<vmem>>, vector<2x24xf32>
    %c8_77 = arith.constant 8 : index
    %c48_78 = arith.constant 48 : index
    %50 = vector.load %arg15[%c8_77, %c48_78] : memref<16x216xf32, #tpu.memory_space<vmem>>, vector<2x24xf32>
    tpu.vector_store %arg15[%c8_77, %c48_78], %49 {strides = array<i32>} : memref<16x216xf32, #tpu.memory_space<vmem>>, vector<2x24xf32>,
    %c4_79 = arith.constant 4 : index
    %c40_80 = arith.constant 40 : index
    %51 = vector.load %arg14[%c4_79, %c40_80] : memref<18x80xf32, #tpu.memory_space<vmem>>, vector<2x24xf32>
    %c10_81 = arith.constant 10 : index
    %c48_82 = arith.constant 48 : index
    %52 = vector.load %arg15[%c10_81, %c48_82] : memref<16x216xf32, #tpu.memory_space<vmem>>, vector<2x24xf32>
    tpu.vector_store %arg15[%c10_81, %c48_82], %51 {strides = array<i32>} : memref<16x216xf32, #tpu.memory_space<vmem>>, vector<2x24xf32>,
    %c4_83 = arith.constant 4 : index
    %c48_84 = arith.constant 48 : index
    %53 = vector.load %arg14[%c4_83, %c48_84] : memref<18x80xf32, #tpu.memory_space<vmem>>, vector<2x24xf32>
    %c12_85 = arith.constant 12 : index
    %c48_86 = arith.constant 48 : index
    %54 = vector.load %arg15[%c12_85, %c48_86] : memref<16x216xf32, #tpu.memory_space<vmem>>, vector<2x24xf32>
    tpu.vector_store %arg15[%c12_85, %c48_86], %53 {strides = array<i32>} : memref<16x216xf32, #tpu.memory_space<vmem>>, vector<2x24xf32>,
    %c4_87 = arith.constant 4 : index
    %c56_88 = arith.constant 56 : index
    %55 = vector.load %arg14[%c4_87, %c56_88] : memref<18x80xf32, #tpu.memory_space<vmem>>, vector<2x24xf32>
    %c14_89 = arith.constant 14 : index
    %c48_90 = arith.constant 48 : index
    %56 = vector.load %arg15[%c14_89, %c48_90] : memref<16x216xf32, #tpu.memory_space<vmem>>, vector<2x24xf32>
    tpu.vector_store %arg15[%c14_89, %c48_90], %55 {strides = array<i32>} : memref<16x216xf32, #tpu.memory_space<vmem>>, vector<2x24xf32>,
    %c6_91 = arith.constant 6 : index
    %c0_92 = arith.constant 0 : index
    %57 = vector.load %arg14[%c6_91, %c0_92] : memref<18x80xf32, #tpu.memory_space<vmem>>, vector<2x24xf32>
    %c0_93 = arith.constant 0 : index
    %c72 = arith.constant 72 : index
    %58 = vector.load %arg15[%c0_93, %c72] : memref<16x216xf32, #tpu.memory_space<vmem>>, vector<2x24xf32>
    tpu.vector_store %arg15[%c0_93, %c72], %57 {strides = array<i32>} : memref<16x216xf32, #tpu.memory_space<vmem>>, vector<2x24xf32>,
    %c6_94 = arith.constant 6 : index
    %c8_95 = arith.constant 8 : index
    %59 = vector.load %arg14[%c6_94, %c8_95] : memref<18x80xf32, #tpu.memory_space<vmem>>, vector<2x24xf32>
    %c2_96 = arith.constant 2 : index
    %c72_97 = arith.constant 72 : index
    %60 = vector.load %arg15[%c2_96, %c72_97] : memref<16x216xf32, #tpu.memory_space<vmem>>, vector<2x24xf32>
    tpu.vector_store %arg15[%c2_96, %c72_97], %59 {strides = array<i32>} : memref<16x216xf32, #tpu.memory_space<vmem>>, vector<2x24xf32>,
    %c6_98 = arith.constant 6 : index
    %c16_99 = arith.constant 16 : index
    %61 = vector.load %arg14[%c6_98, %c16_99] : memref<18x80xf32, #tpu.memory_space<vmem>>, vector<2x24xf32>
    %c4_100 = arith.constant 4 : index
    %c72_101 = arith.constant 72 : index
    %62 = vector.load %arg15[%c4_100, %c72_101] : memref<16x216xf32, #tpu.memory_space<vmem>>, vector<2x24xf32>
    tpu.vector_store %arg15[%c4_100, %c72_101], %61 {strides = array<i32>} : memref<16x216xf32, #tpu.memory_space<vmem>>, vector<2x24xf32>,
    %c6_102 = arith.constant 6 : index
    %c24_103 = arith.constant 24 : index
    %63 = vector.load %arg14[%c6_102, %c24_103] : memref<18x80xf32, #tpu.memory_space<vmem>>, vector<2x24xf32>
    %c6_104 = arith.constant 6 : index
    %c72_105 = arith.constant 72 : index
    %64 = vector.load %arg15[%c6_104, %c72_105] : memref<16x216xf32, #tpu.memory_space<vmem>>, vector<2x24xf32>
    tpu.vector_store %arg15[%c6_104, %c72_105], %63 {strides = array<i32>} : memref<16x216xf32, #tpu.memory_space<vmem>>, vector<2x24xf32>,
    %c6_106 = arith.constant 6 : index
    %c32_107 = arith.constant 32 : index
    %65 = vector.load %arg14[%c6_106, %c32_107] : memref<18x80xf32, #tpu.memory_space<vmem>>, vector<2x24xf32>
    %c8_108 = arith.constant 8 : index
    %c72_109 = arith.constant 72 : index
    %66 = vector.load %arg15[%c8_108, %c72_109] : memref<16x216xf32, #tpu.memory_space<vmem>>, vector<2x24xf32>
    tpu.vector_store %arg15[%c8_108, %c72_109], %65 {strides = array<i32>} : memref<16x216xf32, #tpu.memory_space<vmem>>, vector<2x24xf32>,
    %c6_110 = arith.constant 6 : index
    %c40_111 = arith.constant 40 : index
    %67 = vector.load %arg14[%c6_110, %c40_111] : memref<18x80xf32, #tpu.memory_space<vmem>>, vector<2x24xf32>
    %c10_112 = arith.constant 10 : index
    %c72_113 = arith.constant 72 : index
    %68 = vector.load %arg15[%c10_112, %c72_113] : memref<16x216xf32, #tpu.memory_space<vmem>>, vector<2x24xf32>
    tpu.vector_store %arg15[%c10_112, %c72_113], %67 {strides = array<i32>} : memref<16x216xf32, #tpu.memory_space<vmem>>, vector<2x24xf32>,
    %c6_114 = arith.constant 6 : index
    %c48_115 = arith.constant 48 : index
    %69 = vector.load %arg14[%c6_114, %c48_115] : memref<18x80xf32, #tpu.memory_space<vmem>>, vector<2x24xf32>
    %c12_116 = arith.constant 12 : index
    %c72_117 = arith.constant 72 : index
    %70 = vector.load %arg15[%c12_116, %c72_117] : memref<16x216xf32, #tpu.memory_space<vmem>>, vector<2x24xf32>
    tpu.vector_store %arg15[%c12_116, %c72_117], %69 {strides = array<i32>} : memref<16x216xf32, #tpu.memory_space<vmem>>, vector<2x24xf32>,
    %c6_118 = arith.constant 6 : index
    %c56_119 = arith.constant 56 : index
    %71 = vector.load %arg14[%c6_118, %c56_119] : memref<18x80xf32, #tpu.memory_space<vmem>>, vector<2x24xf32>
    %c14_120 = arith.constant 14 : index
    %c72_121 = arith.constant 72 : index
    %72 = vector.load %arg15[%c14_120, %c72_121] : memref<16x216xf32, #tpu.memory_space<vmem>>, vector<2x24xf32>
    tpu.vector_store %arg15[%c14_120, %c72_121], %71 {strides = array<i32>} : memref<16x216xf32, #tpu.memory_space<vmem>>, vector<2x24xf32>,
    %c8_122 = arith.constant 8 : index
    %c0_123 = arith.constant 0 : index
    %73 = vector.load %arg14[%c8_122, %c0_123] : memref<18x80xf32, #tpu.memory_space<vmem>>, vector<2x24xf32>
    %c0_124 = arith.constant 0 : index
    %c96 = arith.constant 96 : index
    %74 = vector.load %arg15[%c0_124, %c96] : memref<16x216xf32, #tpu.memory_space<vmem>>, vector<2x24xf32>
    tpu.vector_store %arg15[%c0_124, %c96], %73 {strides = array<i32>} : memref<16x216xf32, #tpu.memory_space<vmem>>, vector<2x24xf32>,
    %c8_125 = arith.constant 8 : index
    %c8_126 = arith.constant 8 : index
    %75 = vector.load %arg14[%c8_125, %c8_126] : memref<18x80xf32, #tpu.memory_space<vmem>>, vector<2x24xf32>
    %c2_127 = arith.constant 2 : index
    %c96_128 = arith.constant 96 : index
    %76 = vector.load %arg15[%c2_127, %c96_128] : memref<16x216xf32, #tpu.memory_space<vmem>>, vector<2x24xf32>
    tpu.vector_store %arg15[%c2_127, %c96_128], %75 {strides = array<i32>} : memref<16x216xf32, #tpu.memory_space<vmem>>, vector<2x24xf32>,
    %c8_129 = arith.constant 8 : index
    %c16_130 = arith.constant 16 : index
    %77 = vector.load %arg14[%c8_129, %c16_130] : memref<18x80xf32, #tpu.memory_space<vmem>>, vector<2x24xf32>
    %c4_131 = arith.constant 4 : index
    %c96_132 = arith.constant 96 : index
    %78 = vector.load %arg15[%c4_131, %c96_132] : memref<16x216xf32, #tpu.memory_space<vmem>>, vector<2x24xf32>
    tpu.vector_store %arg15[%c4_131, %c96_132], %77 {strides = array<i32>} : memref<16x216xf32, #tpu.memory_space<vmem>>, vector<2x24xf32>,
    %c8_133 = arith.constant 8 : index
    %c24_134 = arith.constant 24 : index
    %79 = vector.load %arg14[%c8_133, %c24_134] : memref<18x80xf32, #tpu.memory_space<vmem>>, vector<2x24xf32>
    %c6_135 = arith.constant 6 : index
    %c96_136 = arith.constant 96 : index
    %80 = vector.load %arg15[%c6_135, %c96_136] : memref<16x216xf32, #tpu.memory_space<vmem>>, vector<2x24xf32>
    tpu.vector_store %arg15[%c6_135, %c96_136], %79 {strides = array<i32>} : memref<16x216xf32, #tpu.memory_space<vmem>>, vector<2x24xf32>,
    %c8_137 = arith.constant 8 : index
    %c32_138 = arith.constant 32 : index
    %81 = vector.load %arg14[%c8_137, %c32_138] : memref<18x80xf32, #tpu.memory_space<vmem>>, vector<2x24xf32>
    %c8_139 = arith.constant 8 : index
    %c96_140 = arith.constant 96 : index
    %82 = vector.load %arg15[%c8_139, %c96_140] : memref<16x216xf32, #tpu.memory_space<vmem>>, vector<2x24xf32>
    tpu.vector_store %arg15[%c8_139, %c96_140], %81 {strides = array<i32>} : memref<16x216xf32, #tpu.memory_space<vmem>>, vector<2x24xf32>,
    %c8_141 = arith.constant 8 : index
    %c40_142 = arith.constant 40 : index
    %83 = vector.load %arg14[%c8_141, %c40_142] : memref<18x80xf32, #tpu.memory_space<vmem>>, vector<2x24xf32>
    %c10_143 = arith.constant 10 : index
    %c96_144 = arith.constant 96 : index
    %84 = vector.load %arg15[%c10_143, %c96_144] : memref<16x216xf32, #tpu.memory_space<vmem>>, vector<2x24xf32>
    tpu.vector_store %arg15[%c10_143, %c96_144], %83 {strides = array<i32>} : memref<16x216xf32, #tpu.memory_space<vmem>>, vector<2x24xf32>,
    %c8_145 = arith.constant 8 : index
    %c48_146 = arith.constant 48 : index
    %85 = vector.load %arg14[%c8_145, %c48_146] : memref<18x80xf32, #tpu.memory_space<vmem>>, vector<2x24xf32>
    %c12_147 = arith.constant 12 : index
    %c96_148 = arith.constant 96 : index
    %86 = vector.load %arg15[%c12_147, %c96_148] : memref<16x216xf32, #tpu.memory_space<vmem>>, vector<2x24xf32>
    tpu.vector_store %arg15[%c12_147, %c96_148], %85 {strides = array<i32>} : memref<16x216xf32, #tpu.memory_space<vmem>>, vector<2x24xf32>,
    %c8_149 = arith.constant 8 : index
    %c56_150 = arith.constant 56 : index
    %87 = vector.load %arg14[%c8_149, %c56_150] : memref<18x80xf32, #tpu.memory_space<vmem>>, vector<2x24xf32>
    %c14_151 = arith.constant 14 : index
    %c96_152 = arith.constant 96 : index
    %88 = vector.load %arg15[%c14_151, %c96_152] : memref<16x216xf32, #tpu.memory_space<vmem>>, vector<2x24xf32>
    tpu.vector_store %arg15[%c14_151, %c96_152], %87 {strides = array<i32>} : memref<16x216xf32, #tpu.memory_space<vmem>>, vector<2x24xf32>,
    %c10_153 = arith.constant 10 : index
    %c0_154 = arith.constant 0 : index
    %89 = vector.load %arg14[%c10_153, %c0_154] : memref<18x80xf32, #tpu.memory_space<vmem>>, vector<2x24xf32>
    %c0_155 = arith.constant 0 : index
    %c120 = arith.constant 120 : index
    %90 = vector.load %arg15[%c0_155, %c120] : memref<16x216xf32, #tpu.memory_space<vmem>>, vector<2x24xf32>
    tpu.vector_store %arg15[%c0_155, %c120], %89 {strides = array<i32>} : memref<16x216xf32, #tpu.memory_space<vmem>>, vector<2x24xf32>,
    %c10_156 = arith.constant 10 : index
    %c8_157 = arith.constant 8 : index
    %91 = vector.load %arg14[%c10_156, %c8_157] : memref<18x80xf32, #tpu.memory_space<vmem>>, vector<2x24xf32>
    %c2_158 = arith.constant 2 : index
    %c120_159 = arith.constant 120 : index
    %92 = vector.load %arg15[%c2_158, %c120_159] : memref<16x216xf32, #tpu.memory_space<vmem>>, vector<2x24xf32>
    tpu.vector_store %arg15[%c2_158, %c120_159], %91 {strides = array<i32>} : memref<16x216xf32, #tpu.memory_space<vmem>>, vector<2x24xf32>,
    %c10_160 = arith.constant 10 : index
    %c16_161 = arith.constant 16 : index
    %93 = vector.load %arg14[%c10_160, %c16_161] : memref<18x80xf32, #tpu.memory_space<vmem>>, vector<2x24xf32>
    %c4_162 = arith.constant 4 : index
    %c120_163 = arith.constant 120 : index
    %94 = vector.load %arg15[%c4_162, %c120_163] : memref<16x216xf32, #tpu.memory_space<vmem>>, vector<2x24xf32>
    tpu.vector_store %arg15[%c4_162, %c120_163], %93 {strides = array<i32>} : memref<16x216xf32, #tpu.memory_space<vmem>>, vector<2x24xf32>,
    %c10_164 = arith.constant 10 : index
    %c24_165 = arith.constant 24 : index
    %95 = vector.load %arg14[%c10_164, %c24_165] : memref<18x80xf32, #tpu.memory_space<vmem>>, vector<2x24xf32>
    %c6_166 = arith.constant 6 : index
    %c120_167 = arith.constant 120 : index
    %96 = vector.load %arg15[%c6_166, %c120_167] : memref<16x216xf32, #tpu.memory_space<vmem>>, vector<2x24xf32>
    tpu.vector_store %arg15[%c6_166, %c120_167], %95 {strides = array<i32>} : memref<16x216xf32, #tpu.memory_space<vmem>>, vector<2x24xf32>,
    %c10_168 = arith.constant 10 : index
    %c32_169 = arith.constant 32 : index
    %97 = vector.load %arg14[%c10_168, %c32_169] : memref<18x80xf32, #tpu.memory_space<vmem>>, vector<2x24xf32>
    %c8_170 = arith.constant 8 : index
    %c120_171 = arith.constant 120 : index
    %98 = vector.load %arg15[%c8_170, %c120_171] : memref<16x216xf32, #tpu.memory_space<vmem>>, vector<2x24xf32>
    tpu.vector_store %arg15[%c8_170, %c120_171], %97 {strides = array<i32>} : memref<16x216xf32, #tpu.memory_space<vmem>>, vector<2x24xf32>,
    %c10_172 = arith.constant 10 : index
    %c40_173 = arith.constant 40 : index
    %99 = vector.load %arg14[%c10_172, %c40_173] : memref<18x80xf32, #tpu.memory_space<vmem>>, vector<2x24xf32>
    %c10_174 = arith.constant 10 : index
    %c120_175 = arith.constant 120 : index
    %100 = vector.load %arg15[%c10_174, %c120_175] : memref<16x216xf32, #tpu.memory_space<vmem>>, vector<2x24xf32>
    tpu.vector_store %arg15[%c10_174, %c120_175], %99 {strides = array<i32>} : memref<16x216xf32, #tpu.memory_space<vmem>>, vector<2x24xf32>,
    %c10_176 = arith.constant 10 : index
    %c48_177 = arith.constant 48 : index
    %101 = vector.load %arg14[%c10_176, %c48_177] : memref<18x80xf32, #tpu.memory_space<vmem>>, vector<2x24xf32>
    %c12_178 = arith.constant 12 : index
    %c120_179 = arith.constant 120 : index
    %102 = vector.load %arg15[%c12_178, %c120_179] : memref<16x216xf32, #tpu.memory_space<vmem>>, vector<2x24xf32>
    tpu.vector_store %arg15[%c12_178, %c120_179], %101 {strides = array<i32>} : memref<16x216xf32, #tpu.memory_space<vmem>>, vector<2x24xf32>,
    %c10_180 = arith.constant 10 : index
    %c56_181 = arith.constant 56 : index
    %103 = vector.load %arg14[%c10_180, %c56_181] : memref<18x80xf32, #tpu.memory_space<vmem>>, vector<2x24xf32>
    %c14_182 = arith.constant 14 : index
    %c120_183 = arith.constant 120 : index
    %104 = vector.load %arg15[%c14_182, %c120_183] : memref<16x216xf32, #tpu.memory_space<vmem>>, vector<2x24xf32>
    tpu.vector_store %arg15[%c14_182, %c120_183], %103 {strides = array<i32>} : memref<16x216xf32, #tpu.memory_space<vmem>>, vector<2x24xf32>,
    %c12_184 = arith.constant 12 : index
    %c0_185 = arith.constant 0 : index
    %105 = vector.load %arg14[%c12_184, %c0_185] : memref<18x80xf32, #tpu.memory_space<vmem>>, vector<2x24xf32>
    %c0_186 = arith.constant 0 : index
    %c144 = arith.constant 144 : index
    %106 = vector.load %arg15[%c0_186, %c144] : memref<16x216xf32, #tpu.memory_space<vmem>>, vector<2x24xf32>
    tpu.vector_store %arg15[%c0_186, %c144], %105 {strides = array<i32>} : memref<16x216xf32, #tpu.memory_space<vmem>>, vector<2x24xf32>,
    %c12_187 = arith.constant 12 : index
    %c8_188 = arith.constant 8 : index
    %107 = vector.load %arg14[%c12_187, %c8_188] : memref<18x80xf32, #tpu.memory_space<vmem>>, vector<2x24xf32>
    %c2_189 = arith.constant 2 : index
    %c144_190 = arith.constant 144 : index
    %108 = vector.load %arg15[%c2_189, %c144_190] : memref<16x216xf32, #tpu.memory_space<vmem>>, vector<2x24xf32>
    tpu.vector_store %arg15[%c2_189, %c144_190], %107 {strides = array<i32>} : memref<16x216xf32, #tpu.memory_space<vmem>>, vector<2x24xf32>,
    %c12_191 = arith.constant 12 : index
    %c16_192 = arith.constant 16 : index
    %109 = vector.load %arg14[%c12_191, %c16_192] : memref<18x80xf32, #tpu.memory_space<vmem>>, vector<2x24xf32>
    %c4_193 = arith.constant 4 : index
    %c144_194 = arith.constant 144 : index
    %110 = vector.load %arg15[%c4_193, %c144_194] : memref<16x216xf32, #tpu.memory_space<vmem>>, vector<2x24xf32>
    tpu.vector_store %arg15[%c4_193, %c144_194], %109 {strides = array<i32>} : memref<16x216xf32, #tpu.memory_space<vmem>>, vector<2x24xf32>,
    %c12_195 = arith.constant 12 : index
    %c24_196 = arith.constant 24 : index
    %111 = vector.load %arg14[%c12_195, %c24_196] : memref<18x80xf32, #tpu.memory_space<vmem>>, vector<2x24xf32>
    %c6_197 = arith.constant 6 : index
    %c144_198 = arith.constant 144 : index
    %112 = vector.load %arg15[%c6_197, %c144_198] : memref<16x216xf32, #tpu.memory_space<vmem>>, vector<2x24xf32>
    tpu.vector_store %arg15[%c6_197, %c144_198], %111 {strides = array<i32>} : memref<16x216xf32, #tpu.memory_space<vmem>>, vector<2x24xf32>,
    %c12_199 = arith.constant 12 : index
    %c32_200 = arith.constant 32 : index
    %113 = vector.load %arg14[%c12_199, %c32_200] : memref<18x80xf32, #tpu.memory_space<vmem>>, vector<2x24xf32>
    %c8_201 = arith.constant 8 : index
    %c144_202 = arith.constant 144 : index
    %114 = vector.load %arg15[%c8_201, %c144_202] : memref<16x216xf32, #tpu.memory_space<vmem>>, vector<2x24xf32>
    tpu.vector_store %arg15[%c8_201, %c144_202], %113 {strides = array<i32>} : memref<16x216xf32, #tpu.memory_space<vmem>>, vector<2x24xf32>,
    %c12_203 = arith.constant 12 : index
    %c40_204 = arith.constant 40 : index
    %115 = vector.load %arg14[%c12_203, %c40_204] : memref<18x80xf32, #tpu.memory_space<vmem>>, vector<2x24xf32>
    %c10_205 = arith.constant 10 : index
    %c144_206 = arith.constant 144 : index
    %116 = vector.load %arg15[%c10_205, %c144_206] : memref<16x216xf32, #tpu.memory_space<vmem>>, vector<2x24xf32>
    tpu.vector_store %arg15[%c10_205, %c144_206], %115 {strides = array<i32>} : memref<16x216xf32, #tpu.memory_space<vmem>>, vector<2x24xf32>,
    %c12_207 = arith.constant 12 : index
    %c48_208 = arith.constant 48 : index
    %117 = vector.load %arg14[%c12_207, %c48_208] : memref<18x80xf32, #tpu.memory_space<vmem>>, vector<2x24xf32>
    %c12_209 = arith.constant 12 : index
    %c144_210 = arith.constant 144 : index
    %118 = vector.load %arg15[%c12_209, %c144_210] : memref<16x216xf32, #tpu.memory_space<vmem>>, vector<2x24xf32>
    tpu.vector_store %arg15[%c12_209, %c144_210], %117 {strides = array<i32>} : memref<16x216xf32, #tpu.memory_space<vmem>>, vector<2x24xf32>,
    %c12_211 = arith.constant 12 : index
    %c56_212 = arith.constant 56 : index
    %119 = vector.load %arg14[%c12_211, %c56_212] : memref<18x80xf32, #tpu.memory_space<vmem>>, vector<2x24xf32>
    %c14_213 = arith.constant 14 : index
    %c144_214 = arith.constant 144 : index
    %120 = vector.load %arg15[%c14_213, %c144_214] : memref<16x216xf32, #tpu.memory_space<vmem>>, vector<2x24xf32>
    tpu.vector_store %arg15[%c14_213, %c144_214], %119 {strides = array<i32>} : memref<16x216xf32, #tpu.memory_space<vmem>>, vector<2x24xf32>,
    %c14_215 = arith.constant 14 : index
    %c0_216 = arith.constant 0 : index
    %121 = vector.load %arg14[%c14_215, %c0_216] : memref<18x80xf32, #tpu.memory_space<vmem>>, vector<2x24xf32>
    %c0_217 = arith.constant 0 : index
    %c168 = arith.constant 168 : index
    %122 = vector.load %arg15[%c0_217, %c168] : memref<16x216xf32, #tpu.memory_space<vmem>>, vector<2x24xf32>
    tpu.vector_store %arg15[%c0_217, %c168], %121 {strides = array<i32>} : memref<16x216xf32, #tpu.memory_space<vmem>>, vector<2x24xf32>,
    %c14_218 = arith.constant 14 : index
    %c8_219 = arith.constant 8 : index
    %123 = vector.load %arg14[%c14_218, %c8_219] : memref<18x80xf32, #tpu.memory_space<vmem>>, vector<2x24xf32>
    %c2_220 = arith.constant 2 : index
    %c168_221 = arith.constant 168 : index
    %124 = vector.load %arg15[%c2_220, %c168_221] : memref<16x216xf32, #tpu.memory_space<vmem>>, vector<2x24xf32>
    tpu.vector_store %arg15[%c2_220, %c168_221], %123 {strides = array<i32>} : memref<16x216xf32, #tpu.memory_space<vmem>>, vector<2x24xf32>,
    %c14_222 = arith.constant 14 : index
    %c16_223 = arith.constant 16 : index
    %125 = vector.load %arg14[%c14_222, %c16_223] : memref<18x80xf32, #tpu.memory_space<vmem>>, vector<2x24xf32>
    %c4_224 = arith.constant 4 : index
    %c168_225 = arith.constant 168 : index
    %126 = vector.load %arg15[%c4_224, %c168_225] : memref<16x216xf32, #tpu.memory_space<vmem>>, vector<2x24xf32>
    tpu.vector_store %arg15[%c4_224, %c168_225], %125 {strides = array<i32>} : memref<16x216xf32, #tpu.memory_space<vmem>>, vector<2x24xf32>,
    %c14_226 = arith.constant 14 : index
    %c24_227 = arith.constant 24 : index
    %127 = vector.load %arg14[%c14_226, %c24_227] : memref<18x80xf32, #tpu.memory_space<vmem>>, vector<2x24xf32>
    %c6_228 = arith.constant 6 : index
    %c168_229 = arith.constant 168 : index
    %128 = vector.load %arg15[%c6_228, %c168_229] : memref<16x216xf32, #tpu.memory_space<vmem>>, vector<2x24xf32>
    tpu.vector_store %arg15[%c6_228, %c168_229], %127 {strides = array<i32>} : memref<16x216xf32, #tpu.memory_space<vmem>>, vector<2x24xf32>,
    %c14_230 = arith.constant 14 : index
    %c32_231 = arith.constant 32 : index
    %129 = vector.load %arg14[%c14_230, %c32_231] : memref<18x80xf32, #tpu.memory_space<vmem>>, vector<2x24xf32>
    %c8_232 = arith.constant 8 : index
    %c168_233 = arith.constant 168 : index
    %130 = vector.load %arg15[%c8_232, %c168_233] : memref<16x216xf32, #tpu.memory_space<vmem>>, vector<2x24xf32>
    tpu.vector_store %arg15[%c8_232, %c168_233], %129 {strides = array<i32>} : memref<16x216xf32, #tpu.memory_space<vmem>>, vector<2x24xf32>,
    %c14_234 = arith.constant 14 : index
    %c40_235 = arith.constant 40 : index
    %131 = vector.load %arg14[%c14_234, %c40_235] : memref<18x80xf32, #tpu.memory_space<vmem>>, vector<2x24xf32>
    %c10_236 = arith.constant 10 : index
    %c168_237 = arith.constant 168 : index
    %132 = vector.load %arg15[%c10_236, %c168_237] : memref<16x216xf32, #tpu.memory_space<vmem>>, vector<2x24xf32>
    tpu.vector_store %arg15[%c10_236, %c168_237], %131 {strides = array<i32>} : memref<16x216xf32, #tpu.memory_space<vmem>>, vector<2x24xf32>,
    %c14_238 = arith.constant 14 : index
    %c48_239 = arith.constant 48 : index
    %133 = vector.load %arg14[%c14_238, %c48_239] : memref<18x80xf32, #tpu.memory_space<vmem>>, vector<2x24xf32>
    %c12_240 = arith.constant 12 : index
    %c168_241 = arith.constant 168 : index
    %134 = vector.load %arg15[%c12_240, %c168_241] : memref<16x216xf32, #tpu.memory_space<vmem>>, vector<2x24xf32>
    tpu.vector_store %arg15[%c12_240, %c168_241], %133 {strides = array<i32>} : memref<16x216xf32, #tpu.memory_space<vmem>>, vector<2x24xf32>,
    %c14_242 = arith.constant 14 : index
    %c56_243 = arith.constant 56 : index
    %135 = vector.load %arg14[%c14_242, %c56_243] : memref<18x80xf32, #tpu.memory_space<vmem>>, vector<2x24xf32>
    %c14_244 = arith.constant 14 : index
    %c168_245 = arith.constant 168 : index
    %136 = vector.load %arg15[%c14_244, %c168_245] : memref<16x216xf32, #tpu.memory_space<vmem>>, vector<2x24xf32>
    tpu.vector_store %arg15[%c14_244, %c168_245], %135 {strides = array<i32>} : memref<16x216xf32, #tpu.memory_space<vmem>>, vector<2x24xf32>,
    %c16_246 = arith.constant 16 : index
    %c0_247 = arith.constant 0 : index
    %137 = vector.load %arg14[%c16_246, %c0_247] : memref<18x80xf32, #tpu.memory_space<vmem>>, vector<2x24xf32>
    %c0_248 = arith.constant 0 : index
    %c192 = arith.constant 192 : index
    %138 = vector.load %arg15[%c0_248, %c192] : memref<16x216xf32, #tpu.memory_space<vmem>>, vector<2x24xf32>
    tpu.vector_store %arg15[%c0_248, %c192], %137 {strides = array<i32>} : memref<16x216xf32, #tpu.memory_space<vmem>>, vector<2x24xf32>,
    %c16_249 = arith.constant 16 : index
    %c8_250 = arith.constant 8 : index
    %139 = vector.load %arg14[%c16_249, %c8_250] : memref<18x80xf32, #tpu.memory_space<vmem>>, vector<2x24xf32>
    %c2_251 = arith.constant 2 : index
    %c192_252 = arith.constant 192 : index
    %140 = vector.load %arg15[%c2_251, %c192_252] : memref<16x216xf32, #tpu.memory_space<vmem>>, vector<2x24xf32>
    tpu.vector_store %arg15[%c2_251, %c192_252], %139 {strides = array<i32>} : memref<16x216xf32, #tpu.memory_space<vmem>>, vector<2x24xf32>,
    %c16_253 = arith.constant 16 : index
    %c16_254 = arith.constant 16 : index
    %141 = vector.load %arg14[%c16_253, %c16_254] : memref<18x80xf32, #tpu.memory_space<vmem>>, vector<2x24xf32>
    %c4_255 = arith.constant 4 : index
    %c192_256 = arith.constant 192 : index
    %142 = vector.load %arg15[%c4_255, %c192_256] : memref<16x216xf32, #tpu.memory_space<vmem>>, vector<2x24xf32>
    tpu.vector_store %arg15[%c4_255, %c192_256], %141 {strides = array<i32>} : memref<16x216xf32, #tpu.memory_space<vmem>>, vector<2x24xf32>,
    %c16_257 = arith.constant 16 : index
    %c24_258 = arith.constant 24 : index
    %143 = vector.load %arg14[%c16_257, %c24_258] : memref<18x80xf32, #tpu.memory_space<vmem>>, vector<2x24xf32>
    %c6_259 = arith.constant 6 : index
    %c192_260 = arith.constant 192 : index
    %144 = vector.load %arg15[%c6_259, %c192_260] : memref<16x216xf32, #tpu.memory_space<vmem>>, vector<2x24xf32>
    tpu.vector_store %arg15[%c6_259, %c192_260], %143 {strides = array<i32>} : memref<16x216xf32, #tpu.memory_space<vmem>>, vector<2x24xf32>,
    %c16_261 = arith.constant 16 : index
    %c32_262 = arith.constant 32 : index
    %145 = vector.load %arg14[%c16_261, %c32_262] : memref<18x80xf32, #tpu.memory_space<vmem>>, vector<2x24xf32>
    %c8_263 = arith.constant 8 : index
    %c192_264 = arith.constant 192 : index
    %146 = vector.load %arg15[%c8_263, %c192_264] : memref<16x216xf32, #tpu.memory_space<vmem>>, vector<2x24xf32>
    tpu.vector_store %arg15[%c8_263, %c192_264], %145 {strides = array<i32>} : memref<16x216xf32, #tpu.memory_space<vmem>>, vector<2x24xf32>,
    %c16_265 = arith.constant 16 : index
    %c40_266 = arith.constant 40 : index
    %147 = vector.load %arg14[%c16_265, %c40_266] : memref<18x80xf32, #tpu.memory_space<vmem>>, vector<2x24xf32>
    %c10_267 = arith.constant 10 : index
    %c192_268 = arith.constant 192 : index
    %148 = vector.load %arg15[%c10_267, %c192_268] : memref<16x216xf32, #tpu.memory_space<vmem>>, vector<2x24xf32>
    tpu.vector_store %arg15[%c10_267, %c192_268], %147 {strides = array<i32>} : memref<16x216xf32, #tpu.memory_space<vmem>>, vector<2x24xf32>,
    %c16_269 = arith.constant 16 : index
    %c48_270 = arith.constant 48 : index
    %149 = vector.load %arg14[%c16_269, %c48_270] : memref<18x80xf32, #tpu.memory_space<vmem>>, vector<2x24xf32>
    %c12_271 = arith.constant 12 : index
    %c192_272 = arith.constant 192 : index
    %150 = vector.load %arg15[%c12_271, %c192_272] : memref<16x216xf32, #tpu.memory_space<vmem>>, vector<2x24xf32>
    tpu.vector_store %arg15[%c12_271, %c192_272], %149 {strides = array<i32>} : memref<16x216xf32, #tpu.memory_space<vmem>>, vector<2x24xf32>,
    %c16_273 = arith.constant 16 : index
    %c56_274 = arith.constant 56 : index
    %151 = vector.load %arg14[%c16_273, %c56_274] : memref<18x80xf32, #tpu.memory_space<vmem>>, vector<2x24xf32>
    %c14_275 = arith.constant 14 : index
    %c192_276 = arith.constant 192 : index
    %152 = vector.load %arg15[%c14_275, %c192_276] : memref<16x216xf32, #tpu.memory_space<vmem>>, vector<2x24xf32>
    tpu.vector_store %arg15[%c14_275, %c192_276], %151 {strides = array<i32>} : memref<16x216xf32, #tpu.memory_space<vmem>>, vector<2x24xf32>,
    %c0_277 = arith.constant 0 : index
    %c0_278 = arith.constant 0 : index
    %153 = vector.load %arg15[%c0_277, %c0_278] : memref<16x216xf32, #tpu.memory_space<vmem>>, vector<16x216xf32>
    %c0_279 = arith.constant 0 : index
    %c0_280 = arith.constant 0 : index
    %154 = vector.load %arg3[%c0_279, %c0_280] : memref<216x16xf32, #tpu.memory_space<vmem>>, vector<216x16xf32>
    %cst_281 = arith.constant dense<0.000000e+00> : vector<16x16xf32>
    %155 = tpu.matmul %153, %154, %cst_281 {dimension_numbers = #tpu.dot_dimension_numbers<[1], [0], [0], [1], [0, 0, 1, 1], [], []>} : vector<16x216xf32>, vector<216x16xf32>, vector<16x16xf32> -> vector<16x16xf32>
    %c0_282 = arith.constant 0 : index
    %c0_283 = arith.constant 0 : index
    %156 = vector.load %arg4[%c0_282, %c0_283] : memref<1x16xf32, #tpu.memory_space<vmem>>, vector<1x16xf32>
    %157 = vector.broadcast %156 : vector<1x16xf32> to vector<16x16xf32>
    %158 = arith.addf %155, %157 : vector<16x16xf32>
    %cst_284 = arith.constant 0.000000e+00 : f32
    %159 = vector.broadcast %cst_284 : f32 to vector<16x16xf32>
    %160 = arith.maximumf %158, %159 : vector<16x16xf32>
    %c0_285 = arith.constant 0 : index
    %c0_286 = arith.constant 0 : index
    %161 = vector.load %arg16[%c0_285, %c0_286] : memref<16x16xf32, #tpu.memory_space<vmem>>, vector<16x16xf32>
    tpu.vector_store %arg16[%c0_285, %c0_286], %160 {strides = array<i32>} : memref<16x16xf32, #tpu.memory_space<vmem>>, vector<16x16xf32>,
    %c0_287 = arith.constant 0 : index
    %c0_288 = arith.constant 0 : index
    %162 = vector.load %arg16[%c0_287, %c0_288] : memref<16x16xf32, #tpu.memory_space<vmem>>, vector<2x16xf32>
    %c0_289 = arith.constant 0 : index
    %c0_290 = arith.constant 0 : index
    %163 = vector.load %arg17[%c0_289, %c0_290] : memref<2x128xf32, #tpu.memory_space<vmem>>, vector<2x16xf32>
    tpu.vector_store %arg17[%c0_289, %c0_290], %162 {strides = array<i32>} : memref<2x128xf32, #tpu.memory_space<vmem>>, vector<2x16xf32>,
    %c2_291 = arith.constant 2 : index
    %c0_292 = arith.constant 0 : index
    %164 = vector.load %arg16[%c2_291, %c0_292] : memref<16x16xf32, #tpu.memory_space<vmem>>, vector<2x16xf32>
    %c0_293 = arith.constant 0 : index
    %c16_294 = arith.constant 16 : index
    %165 = vector.load %arg17[%c0_293, %c16_294] : memref<2x128xf32, #tpu.memory_space<vmem>>, vector<2x16xf32>
    tpu.vector_store %arg17[%c0_293, %c16_294], %164 {strides = array<i32>} : memref<2x128xf32, #tpu.memory_space<vmem>>, vector<2x16xf32>,
    %c4_295 = arith.constant 4 : index
    %c0_296 = arith.constant 0 : index
    %166 = vector.load %arg16[%c4_295, %c0_296] : memref<16x16xf32, #tpu.memory_space<vmem>>, vector<2x16xf32>
    %c0_297 = arith.constant 0 : index
    %c32_298 = arith.constant 32 : index
    %167 = vector.load %arg17[%c0_297, %c32_298] : memref<2x128xf32, #tpu.memory_space<vmem>>, vector<2x16xf32>
    tpu.vector_store %arg17[%c0_297, %c32_298], %166 {strides = array<i32>} : memref<2x128xf32, #tpu.memory_space<vmem>>, vector<2x16xf32>,
    %c6_299 = arith.constant 6 : index
    %c0_300 = arith.constant 0 : index
    %168 = vector.load %arg16[%c6_299, %c0_300] : memref<16x16xf32, #tpu.memory_space<vmem>>, vector<2x16xf32>
    %c0_301 = arith.constant 0 : index
    %c48_302 = arith.constant 48 : index
    %169 = vector.load %arg17[%c0_301, %c48_302] : memref<2x128xf32, #tpu.memory_space<vmem>>, vector<2x16xf32>
    tpu.vector_store %arg17[%c0_301, %c48_302], %168 {strides = array<i32>} : memref<2x128xf32, #tpu.memory_space<vmem>>, vector<2x16xf32>,
    %c8_303 = arith.constant 8 : index
    %c0_304 = arith.constant 0 : index
    %170 = vector.load %arg16[%c8_303, %c0_304] : memref<16x16xf32, #tpu.memory_space<vmem>>, vector<2x16xf32>
    %c0_305 = arith.constant 0 : index
    %c64 = arith.constant 64 : index
    %171 = vector.load %arg17[%c0_305, %c64] : memref<2x128xf32, #tpu.memory_space<vmem>>, vector<2x16xf32>
    tpu.vector_store %arg17[%c0_305, %c64], %170 {strides = array<i32>} : memref<2x128xf32, #tpu.memory_space<vmem>>, vector<2x16xf32>,
    %c10_306 = arith.constant 10 : index
    %c0_307 = arith.constant 0 : index
    %172 = vector.load %arg16[%c10_306, %c0_307] : memref<16x16xf32, #tpu.memory_space<vmem>>, vector<2x16xf32>
    %c0_308 = arith.constant 0 : index
    %c80 = arith.constant 80 : index
    %173 = vector.load %arg17[%c0_308, %c80] : memref<2x128xf32, #tpu.memory_space<vmem>>, vector<2x16xf32>
    tpu.vector_store %arg17[%c0_308, %c80], %172 {strides = array<i32>} : memref<2x128xf32, #tpu.memory_space<vmem>>, vector<2x16xf32>,
    %c12_309 = arith.constant 12 : index
    %c0_310 = arith.constant 0 : index
    %174 = vector.load %arg16[%c12_309, %c0_310] : memref<16x16xf32, #tpu.memory_space<vmem>>, vector<2x16xf32>
    %c0_311 = arith.constant 0 : index
    %c96_312 = arith.constant 96 : index
    %175 = vector.load %arg17[%c0_311, %c96_312] : memref<2x128xf32, #tpu.memory_space<vmem>>, vector<2x16xf32>
    tpu.vector_store %arg17[%c0_311, %c96_312], %174 {strides = array<i32>} : memref<2x128xf32, #tpu.memory_space<vmem>>, vector<2x16xf32>,
    %c14_313 = arith.constant 14 : index
    %c0_314 = arith.constant 0 : index
    %176 = vector.load %arg16[%c14_313, %c0_314] : memref<16x16xf32, #tpu.memory_space<vmem>>, vector<2x16xf32>
    %c0_315 = arith.constant 0 : index
    %c112 = arith.constant 112 : index
    %177 = vector.load %arg17[%c0_315, %c112] : memref<2x128xf32, #tpu.memory_space<vmem>>, vector<2x16xf32>
    tpu.vector_store %arg17[%c0_315, %c112], %176 {strides = array<i32>} : memref<2x128xf32, #tpu.memory_space<vmem>>, vector<2x16xf32>,
    %c0_316 = arith.constant 0 : index
    %c0_317 = arith.constant 0 : index
    %178 = vector.load %arg17[%c0_316, %c0_317] : memref<2x128xf32, #tpu.memory_space<vmem>>, vector<2x128xf32>
    %c0_318 = arith.constant 0 : index
    %c0_319 = arith.constant 0 : index
    %179 = vector.load %arg5[%c0_318, %c0_319] : memref<128x64xf32, #tpu.memory_space<vmem>>, vector<128x64xf32>
    %cst_320 = arith.constant dense<0.000000e+00> : vector<2x64xf32>
    %180 = tpu.matmul %178, %179, %cst_320 {dimension_numbers = #tpu.dot_dimension_numbers<[1], [0], [0], [1], [0, 0, 1, 1], [], []>} : vector<2x128xf32>, vector<128x64xf32>, vector<2x64xf32> -> vector<2x64xf32>
    %c0_321 = arith.constant 0 : index
    %c0_322 = arith.constant 0 : index
    %181 = vector.load %arg6[%c0_321, %c0_322] : memref<1x64xf32, #tpu.memory_space<vmem>>, vector<1x64xf32>
    %182 = vector.broadcast %181 : vector<1x64xf32> to vector<2x64xf32>
    %183 = arith.addf %180, %182 : vector<2x64xf32>
    %cst_323 = arith.constant 0.000000e+00 : f32
    %184 = vector.broadcast %cst_323 : f32 to vector<2x64xf32>
    %185 = arith.maximumf %183, %184 : vector<2x64xf32>
    %c0_324 = arith.constant 0 : index
    %c0_325 = arith.constant 0 : index
    %186 = vector.load %arg7[%c0_324, %c0_325] : memref<64x256xf32, #tpu.memory_space<vmem>>, vector<64x256xf32>
    %cst_326 = arith.constant dense<0.000000e+00> : vector<2x256xf32>
    %187 = tpu.matmul %185, %186, %cst_326 {dimension_numbers = #tpu.dot_dimension_numbers<[1], [0], [0], [1], [0, 0, 1, 1], [], []>} : vector<2x64xf32>, vector<64x256xf32>, vector<2x256xf32> -> vector<2x256xf32>
    %c0_327 = arith.constant 0 : index
    %c0_328 = arith.constant 0 : index
    %188 = vector.load %arg8[%c0_327, %c0_328] : memref<1x256xf32, #tpu.memory_space<vmem>>, vector<1x256xf32>
    %189 = vector.broadcast %188 : vector<1x256xf32> to vector<2x256xf32>
    %190 = arith.addf %187, %189 : vector<2x256xf32>
    %cst_329 = arith.constant 0.000000e+00 : f32
    %191 = vector.broadcast %cst_329 : f32 to vector<2x256xf32>
    %192 = arith.maximumf %190, %191 : vector<2x256xf32>
    %c0_330 = arith.constant 0 : index
    %c0_331 = arith.constant 0 : index
    %193 = vector.load %arg9[%c0_330, %c0_331] : memref<256x128xf32, #tpu.memory_space<vmem>>, vector<256x128xf32>
    %cst_332 = arith.constant dense<0.000000e+00> : vector<2x128xf32>
    %194 = tpu.matmul %192, %193, %cst_332 {dimension_numbers = #tpu.dot_dimension_numbers<[1], [0], [0], [1], [0, 0, 1, 1], [], []>} : vector<2x256xf32>, vector<256x128xf32>, vector<2x128xf32> -> vector<2x128xf32>
    %c0_333 = arith.constant 0 : index
    %c0_334 = arith.constant 0 : index
    %195 = vector.load %arg10[%c0_333, %c0_334] : memref<1x128xf32, #tpu.memory_space<vmem>>, vector<1x128xf32>
    %196 = vector.broadcast %195 : vector<1x128xf32> to vector<2x128xf32>
    %197 = arith.addf %194, %196 : vector<2x128xf32>
    %cst_335 = arith.constant 0.000000e+00 : f32
    %198 = vector.broadcast %cst_335 : f32 to vector<2x128xf32>
    %199 = arith.maximumf %197, %198 : vector<2x128xf32>
    %c0_336 = arith.constant 0 : index
    %c0_337 = arith.constant 0 : index
    %200 = vector.load %arg11[%c0_336, %c0_337] : memref<128x6xf32, #tpu.memory_space<vmem>>, vector<128x6xf32>
    %cst_338 = arith.constant dense<0.000000e+00> : vector<2x6xf32>
    %201 = tpu.matmul %199, %200, %cst_338 {dimension_numbers = #tpu.dot_dimension_numbers<[1], [0], [0], [1], [0, 0, 1, 1], [], []>} : vector<2x128xf32>, vector<128x6xf32>, vector<2x6xf32> -> vector<2x6xf32>
    %c0_339 = arith.constant 0 : index
    %c0_340 = arith.constant 0 : index
    %202 = vector.load %arg12[%c0_339, %c0_340] : memref<1x6xf32, #tpu.memory_space<vmem>>, vector<1x6xf32>
    %203 = vector.broadcast %202 : vector<1x6xf32> to vector<2x6xf32>
    %204 = arith.addf %201, %203 : vector<2x6xf32>
    %c0_341 = arith.constant 0 : index
    %c0_342 = arith.constant 0 : index
    %205 = vector.load %arg13[%c0_341, %c0_342] : memref<2x6xf32, #tpu.memory_space<vmem>>, vector<2x6xf32>
    tpu.vector_store %arg13[%c0_341, %c0_342], %204 {strides = array<i32>} : memref<2x6xf32, #tpu.memory_space<vmem>>, vector<2x6xf32>,
    return
  }
}

</mosaic_0001>

<llo_original>
// kernel: randcomb_forward.1
$region0: #{randcomb_forward.1}
  #allocation0 [shape = 'u32[]', space=smem, size = 0x4, offset = 0x4, fixed_abs, tag = 'smem constant byte address 0x4 - core index']
  #allocation1 [shape = 'u32[72,128]{1,0:T(1,128)}', space=vmem, size = 0x9000, scoped, tag = 'internal scratch']
  #allocation2 [shape = 'f32[18,80]{1,0:T(8,128)}', space=vmem, size = 0x3000, scoped, tag = 'scratch operand']
  #allocation3 [shape = 'f32[16,216]{1,0:T(8,128)}', space=vmem, size = 0x4000, scoped, tag = 'scratch operand']
  #allocation4 [shape = 'f32[16,16]{1,0:T(8,128)}', space=vmem, size = 0x2000, scoped, tag = 'scratch operand']
  #allocation5 [shape = 'f32[2,128]{1,0:T(2,128)}', space=vmem, size = 0x400, scoped, tag = 'scratch operand']
  %s0 = inlined_call_operand.vmem [shape: f32[18,108], index: 0, kind: input, shape index: {}]
  %s1 = inlined_call_operand.vmem [shape: f32[108,80], index: 1, kind: input, shape index: {}]
  %s2 = inlined_call_operand.vmem [shape: f32[1,80], index: 2, kind: input, shape index: {}]
  %s3 = inlined_call_operand.vmem [shape: f32[216,16], index: 3, kind: input, shape index: {}]
  %s4 = inlined_call_operand.vmem [shape: f32[1,16], index: 4, kind: input, shape index: {}]
  %s5 = inlined_call_operand.vmem [shape: f32[128,64], index: 5, kind: input, shape index: {}]
  %s6 = inlined_call_operand.vmem [shape: f32[1,64], index: 6, kind: input, shape index: {}]
  %s7 = inlined_call_operand.vmem [shape: f32[64,256], index: 7, kind: input, shape index: {}]
  %s8 = inlined_call_operand.vmem [shape: f32[1,256], index: 8, kind: input, shape index: {}]
  %s9 = inlined_call_operand.vmem [shape: f32[256,128], index: 9, kind: input, shape index: {}]
  %s10 = inlined_call_operand.vmem [shape: f32[1,128], index: 10, kind: input, shape index: {}]
  %s11 = inlined_call_operand.vmem [shape: f32[128,6], index: 11, kind: input, shape index: {}]
  %s12 = inlined_call_operand.vmem [shape: f32[1,6], index: 12, kind: input, shape index: {}]
  %s13 = inlined_call_operand.hbm [shape: f32[2,6], index: 13, kind: output, shape index: {}]
  %s14 = sld [smem:[#allocation0]]
  $region62: #{randcomb_forward.1} parent=0
    _
  %s16 = ssub.s32 1, %s14
  %s17 = scalar_select 0, %s16, %s14
  $region1: #{randcomb_forward.1} parent=0
    #allocation6 [shape = 'u8[1024]{0}', space=vmem, size = 0x400, scoped, tag = 'output window, operand 0, single buffered']
    #allocation7 [shape = 's32[1]{0}', space=sflag, size = 0x4, scoped, tag = 'scoped memory for randcomb_forward.1']
    %18 = vsyncpa [#allocation7], 0
    // Predicated region
    $region2: #{randcomb_forward.1} parent=1 // pred_check
      _
    $region3: #{randcomb_forward.1} parent=1 // pred_check_branch
      %20 = sbr.rel (0) target = $region5
    $region4: #{randcomb_forward.1} parent=1 // pred_region
      _
    $region5: #{randcomb_forward.1} parent=1 // pred_fallthru
      _
    // Predicated region
    $region6: #{randcomb_forward.1} parent=1 // pred_check
      _
    $region7: #{randcomb_forward.1} parent=1 // pred_check_branch
      %22 = sbr.rel (0) target = $region9
    $region8: #{randcomb_forward.1} parent=1 // pred_region
      _
    $region9: #{randcomb_forward.1} parent=1 // pred_fallthru
      _
    // Predicated region
    $region10: #{randcomb_forward.1} parent=1 // pred_check
      _
    $region11: #{randcomb_forward.1} parent=1 // pred_check_branch
      %24 = sbr.rel (0) target = $region13
    $region12: #{randcomb_forward.1} parent=1 // pred_region
      _
    $region13: #{randcomb_forward.1} parent=1 // pred_fallthru
      _
    // Predicated region
    $region14: #{randcomb_forward.1} parent=1 // pred_check
      _
    $region15: #{randcomb_forward.1} parent=1 // pred_check_branch
      %26 = sbr.rel (0) target = $region17
    $region16: #{randcomb_forward.1} parent=1 // pred_region
      _
    $region17: #{randcomb_forward.1} parent=1 // pred_fallthru
      _
    // Predicated region
    $region18: #{randcomb_forward.1} parent=1 // pred_check
      _
    $region19: #{randcomb_forward.1} parent=1 // pred_check_branch
      %28 = sbr.rel (0) target = $region21
    $region20: #{randcomb_forward.1} parent=1 // pred_region
      _
    $region21: #{randcomb_forward.1} parent=1 // pred_fallthru
      _
    // Predicated region
    $region22: #{randcomb_forward.1} parent=1 // pred_check
      _
    $region23: #{randcomb_forward.1} parent=1 // pred_check_branch
      %30 = sbr.rel (0) target = $region25
    $region24: #{randcomb_forward.1} parent=1 // pred_region
      _
    $region25: #{randcomb_forward.1} parent=1 // pred_fallthru
      _
    // Predicated region
    $region26: #{randcomb_forward.1} parent=1 // pred_check
      _
    $region27: #{randcomb_forward.1} parent=1 // pred_check_branch
      %32 = sbr.rel (0) target = $region29
    $region28: #{randcomb_forward.1} parent=1 // pred_region
      _
    $region29: #{randcomb_forward.1} parent=1 // pred_fallthru
      _
    // Predicated region
    $region30: #{randcomb_forward.1} parent=1 // pred_check
      _
    $region31: #{randcomb_forward.1} parent=1 // pred_check_branch
      %34 = sbr.rel (0) target = $region33
    $region32: #{randcomb_forward.1} parent=1 // pred_region
      _
    $region33: #{randcomb_forward.1} parent=1 // pred_fallthru
      _
    // Predicated region
    $region34: #{randcomb_forward.1} parent=1 // pred_check
      _
    $region35: #{randcomb_forward.1} parent=1 // pred_check_branch
      %36 = sbr.rel (0) target = $region37
    $region36: #{randcomb_forward.1} parent=1 // pred_region
      _
    $region37: #{randcomb_forward.1} parent=1 // pred_fallthru
      _
    // Predicated region
    $region38: #{randcomb_forward.1} parent=1 // pred_check
      _
    $region39: #{randcomb_forward.1} parent=1 // pred_check_branch
      %38 = sbr.rel (0) target = $region41
    $region40: #{randcomb_forward.1} parent=1 // pred_region
      _
    $region41: #{randcomb_forward.1} parent=1 // pred_fallthru
      _
    // Predicated region
    $region42: #{randcomb_forward.1} parent=1 // pred_check
      _
    $region43: #{randcomb_forward.1} parent=1 // pred_check_branch
      %40 = sbr.rel (0) target = $region45
    $region44: #{randcomb_forward.1} parent=1 // pred_region
      _
    $region45: #{randcomb_forward.1} parent=1 // pred_fallthru
      _
    // Predicated region
    $region46: #{randcomb_forward.1} parent=1 // pred_check
      _
    $region47: #{randcomb_forward.1} parent=1 // pred_check_branch
      %42 = sbr.rel (0) target = $region49
    $region48: #{randcomb_forward.1} parent=1 // pred_region
      _
    $region49: #{randcomb_forward.1} parent=1 // pred_fallthru
      _
    // Predicated region
    $region50: #{randcomb_forward.1} parent=1 // pred_check
      _
    $region51: #{randcomb_forward.1} parent=1 // pred_check_branch
      %44 = sbr.rel (0) target = $region53
    $region52: #{randcomb_forward.1} parent=1 // pred_region
      _
    $region53: #{randcomb_forward.1} parent=1 // pred_fallthru
      _
    %v45 = vld [vmem:[%s0] sm:$0xff]
    %v46 = vld [vmem:[%s0 + $0x8] sm:$0xff]
    %v47 = vld [vmem:[%s0 + $0x10] sm:$0x3]
    %v48 = vld [vmem:[%s1] sm:$0xff]
    %v49 = vld [vmem:[%s1 + $0x8] sm:$0xff]
    %v50 = vld [vmem:[%s1 + $0x10] sm:$0xff]
    %v51 = vld [vmem:[%s1 + $0x18] sm:$0xff]
    %v52 = vld [vmem:[%s1 + $0x20] sm:$0xff]
    %v53 = vld [vmem:[%s1 + $0x28] sm:$0xff]
    %v54 = vld [vmem:[%s1 + $0x30] sm:$0xff]
    %v55 = vld [vmem:[%s1 + $0x38] sm:$0xff]
    %v56 = vld [vmem:[%s1 + $0x40] sm:$0xff]
    %v57 = vld [vmem:[%s1 + $0x48] sm:$0xff]
    %v58 = vld [vmem:[%s1 + $0x50] sm:$0xff]
    %v59 = vld [vmem:[%s1 + $0x58] sm:$0xff]
    %v60 = vld [vmem:[%s1 + $0x60] sm:$0xff]
    %v61 = vld [vmem:[%s1 + $0x68] sm:$0xf]
    %v62 = vld [vmem:[%s2] sm:$0x1]
    %v64 = vperm.slane %v62, 0
    %vm66 = vcmask 883712
    %v68 = vsel %vm66, %v45, 0
    %v71 = vsel %vm66, %v46, 0
    %v74 = vsel %vm66, %v47, 0
    %vm76 = vcmask 1043456
    %v78 = vsel %vm76, %v61, 0
    %80 = vmatpush.msra.mxu0 0.0
    %81 = vmatpush.msra.mxu0 0.0
    %82 = vmatpush.msra.mxu0 %v78
    %83 = vmatpush.msra.mxu0 %v60
    %84 = vmatpush.msra.mxu0 %v59
    %85 = vmatpush.msra.mxu0 %v58
    %86 = vmatpush.msra.mxu0 %v57
    %87 = vmatpush.msra.mxu0 %v56
    %88 = vmatpush.msra.mxu0 %v55
    %89 = vmatpush.msra.mxu0 %v54
    %90 = vmatpush.msra.mxu0 %v53
    %91 = vmatpush.msra.mxu0 %v52
    %92 = vmatpush.msra.mxu0 %v51
    %93 = vmatpush.msra.mxu0 %v50
    %94 = vmatpush.msra.mxu0 %v49
    %95 = vmatpush.msra.mxu0 %v48
    %96 = vmatmul.f32.gmra.mxu0 %v68
    %v97 = vpop.f32.mrf.mxu0
    %v98 = vadd.f32 %v64, %v97
    %99 = vmatmul.f32.gmra.mxu0 %v71
    %v100 = vpop.f32.mrf.mxu0
    %v101 = vadd.f32 %v64, %v100
    %102 = vmatmul.f32.gmra.mxu0 %v74
    %v103 = vpop.f32.mrf.mxu0
    %v104 = vadd.f32 %v64, %v103
    %105 = vdwg.mxu0
    %v106 = vmax.f32 %v98, 0.0
    %v107 = vmax.f32 %v101, 0.0
    %v108 = vmax.f32 %v104, 0.0
    %vm109 = vcmask 654336
    %110 = vst.msk [vmem:[#allocation2] sm:$0xff] %vm109, %v106
    %111 = vst.msk [vmem:[#allocation2 + $0x8] sm:$0xff] %vm109, %v107
    %vm112 = vcmask 648192
    %113 = vst.msk [vmem:[#allocation2 + $0x10] sm:$0x3] %vm112, %v108
    %v114 = vld [vmem:[#allocation2] sm:$0x3]
    %vm115 = vcmask 189440
    %116 = vst.msk [vmem:[#allocation3] sm:$0x3] %vm115, %v114
    %v117 = vld [vmem:[#allocation2] sm:$0x3]
    %v119 = vrot.slane %v117, 6
    %120 = vrot.lane.b32.xlu0 %v119, 120
    %v121 = vpop.permute.xlu0 %120
    %vm123 = vcmask 191490
    %124 = vst.msk [vmem:[#allocation3] sm:$0xc] %vm123, %v121
    %v125 = vld [vmem:[#allocation2] sm:$0x3]
    %v127 = vrot.slane %v125, 4
    %128 = vrot.lane.b32.xlu0 %v127, 112
    %v129 = vpop.permute.xlu0 %128
    %vm131 = vcmask 193540
    %132 = vst.msk [vmem:[#allocation3] sm:$0x30] %vm131, %v129
    %v133 = vld [vmem:[#allocation2] sm:$0x3]
    %v135 = vrot.slane %v133, 2
    %136 = vrot.lane.b32.xlu0 %v135, 104
    %v137 = vpop.permute.xlu0 %136
    %vm139 = vcmask 195590
    %140 = vst.msk [vmem:[#allocation3] sm:$0xc0] %vm139, %v137
    %v141 = vld [vmem:[#allocation2] sm:$0x3]
    %143 = vrot.lane.b32.xlu0 %v141, 96
    %v144 = vpop.permute.xlu0 %143
    %146 = vst.msk [vmem:[#allocation3 + $0x10] sm:$0x3] %vm115, %v144
    %v147 = vld [vmem:[#allocation2] sm:$0x3]
    %v149 = vrot.slane %v147, 6
    %150 = vrot.lane.b32.xlu0 %v149, 88
    %v151 = vpop.permute.xlu0 %150
    %153 = vst.msk [vmem:[#allocation3 + $0x10] sm:$0xc] %vm123, %v151
    %v154 = vld [vmem:[#allocation2] sm:$0x3]
    %v156 = vrot.slane %v154, 4
    %157 = vrot.lane.b32.xlu0 %v156, 80
    %v158 = vpop.permute.xlu0 %157
    %160 = vst.msk [vmem:[#allocation3 + $0x10] sm:$0x30] %vm131, %v158
    %v161 = vld [vmem:[#allocation2] sm:$0x3]
    %v163 = vrot.slane %v161, 2
    %164 = vrot.lane.b32.xlu0 %v163, 72
    %v165 = vpop.permute.xlu0 %164
    %167 = vst.msk [vmem:[#allocation3 + $0x10] sm:$0xc0] %vm139, %v165
    %v168 = vld [vmem:[#allocation2 + $0x2] sm:$0x3]
    %170 = vrot.lane.b32.xlu0 %v168, 24
    %v171 = vpop.permute.xlu0 %170
    %vm173 = vcmask 386240
    %174 = vst.msk [vmem:[#allocation3] sm:$0x3] %vm173, %v171
    %v175 = vld [vmem:[#allocation2 + $0x2] sm:$0x3]
    %v177 = vrot.slane %v175, 6
    %178 = vrot.lane.b32.xlu0 %v177, 16
    %v179 = vpop.permute.xlu0 %178
    %vm181 = vcmask 388290
    %182 = vst.msk [vmem:[#allocation3] sm:$0xc] %vm181, %v179
    %v183 = vld [vmem:[#allocation2 + $0x2] sm:$0x3]
    %v185 = vrot.slane %v183, 4
    %186 = vrot.lane.b32.xlu0 %v185, 8
    %v187 = vpop.permute.xlu0 %186
    %vm189 = vcmask 390340
    %190 = vst.msk [vmem:[#allocation3] sm:$0x30] %vm189, %v187
    %v191 = vld [vmem:[#allocation2 + $0x2] sm:$0x3]
    %v193 = vrot.slane %v191, 2
    %vm195 = vcmask 392390
    %196 = vst.msk [vmem:[#allocation3] sm:$0xc0] %vm195, %v193
    %v197 = vld [vmem:[#allocation2 + $0x2] sm:$0x3]
    %199 = vrot.lane.b32.xlu0 %v197, 120
    %v200 = vpop.permute.xlu0 %199
    %202 = vst.msk [vmem:[#allocation3 + $0x10] sm:$0x3] %vm173, %v200
    %v203 = vld [vmem:[#allocation2 + $0x2] sm:$0x3]
    %v205 = vrot.slane %v203, 6
    %206 = vrot.lane.b32.xlu0 %v205, 112
    %v207 = vpop.permute.xlu0 %206
    %209 = vst.msk [vmem:[#allocation3 + $0x10] sm:$0xc] %vm181, %v207
    %v210 = vld [vmem:[#allocation2 + $0x2] sm:$0x3]
    %v212 = vrot.slane %v210, 4
    %213 = vrot.lane.b32.xlu0 %v212, 104
    %v214 = vpop.permute.xlu0 %213
    %216 = vst.msk [vmem:[#allocation3 + $0x10] sm:$0x30] %vm189, %v214
    %v217 = vld [vmem:[#allocation2 + $0x2] sm:$0x3]
    %v219 = vrot.slane %v217, 2
    %220 = vrot.lane.b32.xlu0 %v219, 96
    %v221 = vpop.permute.xlu0 %220
    %223 = vst.msk [vmem:[#allocation3 + $0x10] sm:$0xc0] %vm195, %v221
    %v224 = vld [vmem:[#allocation2 + $0x4] sm:$0x3]
    %226 = vrot.lane.b32.xlu0 %v224, 48
    %v227 = vpop.permute.xlu0 %226
    %vm229 = vcmask 583040
    %230 = vst.msk [vmem:[#allocation3] sm:$0x3] %vm229, %v227
    %v231 = vld [vmem:[#allocation2 + $0x4] sm:$0x3]
    %v233 = vrot.slane %v231, 6
    %234 = vrot.lane.b32.xlu0 %v233, 40
    %v235 = vpop.permute.xlu0 %234
    %vm237 = vcmask 585090
    %238 = vst.msk [vmem:[#allocation3] sm:$0xc] %vm237, %v235
    %v239 = vld [vmem:[#allocation2 + $0x4] sm:$0x3]
    %v241 = vrot.slane %v239, 4
    %242 = vrot.lane.b32.xlu0 %v241, 32
    %v243 = vpop.permute.xlu0 %242
    %vm245 = vcmask 587140
    %246 = vst.msk [vmem:[#allocation3] sm:$0x30] %vm245, %v243
    %v247 = vld [vmem:[#allocation2 + $0x4] sm:$0x3]
    %v249 = vrot.slane %v247, 2
    %250 = vrot.lane.b32.xlu0 %v249, 24
    %v251 = vpop.permute.xlu0 %250
    %vm253 = vcmask 589190
    %254 = vst.msk [vmem:[#allocation3] sm:$0xc0] %vm253, %v251
    %v255 = vld [vmem:[#allocation2 + $0x4] sm:$0x3]
    %257 = vrot.lane.b32.xlu0 %v255, 16
    %v258 = vpop.permute.xlu0 %257
    %260 = vst.msk [vmem:[#allocation3 + $0x10] sm:$0x3] %vm229, %v258
    %v261 = vld [vmem:[#allocation2 + $0x4] sm:$0x3]
    %v263 = vrot.slane %v261, 6
    %264 = vrot.lane.b32.xlu0 %v263, 8
    %v265 = vpop.permute.xlu0 %264
    %267 = vst.msk [vmem:[#allocation3 + $0x10] sm:$0xc] %vm237, %v265
    %v268 = vld [vmem:[#allocation2 + $0x4] sm:$0x3]
    %v270 = vrot.slane %v268, 4
    %272 = vst.msk [vmem:[#allocation3 + $0x10] sm:$0x30] %vm245, %v270
    %v273 = vld [vmem:[#allocation2 + $0x4] sm:$0x3]
    %v275 = vrot.slane %v273, 2
    %276 = vrot.lane.b32.xlu0 %v275, 120
    %v277 = vpop.permute.xlu0 %276
    %279 = vst.msk [vmem:[#allocation3 + $0x10] sm:$0xc0] %vm253, %v277
    %v280 = vld [vmem:[#allocation2 + $0x6] sm:$0x3]
    %282 = vrot.lane.b32.xlu0 %v280, 72
    %v283 = vpop.permute.xlu0 %282
    %vm285 = vcmask 779840
    %286 = vst.msk [vmem:[#allocation3] sm:$0x3] %vm285, %v283
    %v287 = vld [vmem:[#allocation2 + $0x6] sm:$0x3]
    %v289 = vrot.slane %v287, 6
    %290 = vrot.lane.b32.xlu0 %v289, 64
    %v291 = vpop.permute.xlu0 %290
    %vm293 = vcmask 781890
    %294 = vst.msk [vmem:[#allocation3] sm:$0xc] %vm293, %v291
    %v295 = vld [vmem:[#allocation2 + $0x6] sm:$0x3]
    %v297 = vrot.slane %v295, 4
    %298 = vrot.lane.b32.xlu0 %v297, 56
    %v299 = vpop.permute.xlu0 %298
    %vm301 = vcmask 783940
    %302 = vst.msk [vmem:[#allocation3] sm:$0x30] %vm301, %v299
    %v303 = vld [vmem:[#allocation2 + $0x6] sm:$0x3]
    %v305 = vrot.slane %v303, 2
    %306 = vrot.lane.b32.xlu0 %v305, 48
    %v307 = vpop.permute.xlu0 %306
    %vm309 = vcmask 785990
    %310 = vst.msk [vmem:[#allocation3] sm:$0xc0] %vm309, %v307
    %v311 = vld [vmem:[#allocation2 + $0x6] sm:$0x3]
    %313 = vrot.lane.b32.xlu0 %v311, 40
    %v314 = vpop.permute.xlu0 %313
    %316 = vst.msk [vmem:[#allocation3 + $0x10] sm:$0x3] %vm285, %v314
    %v317 = vld [vmem:[#allocation2 + $0x6] sm:$0x3]
    %v319 = vrot.slane %v317, 6
    %320 = vrot.lane.b32.xlu0 %v319, 32
    %v321 = vpop.permute.xlu0 %320
    %323 = vst.msk [vmem:[#allocation3 + $0x10] sm:$0xc] %vm293, %v321
    %v324 = vld [vmem:[#allocation2 + $0x6] sm:$0x3]
    %v326 = vrot.slane %v324, 4
    %327 = vrot.lane.b32.xlu0 %v326, 24
    %v328 = vpop.permute.xlu0 %327
    %330 = vst.msk [vmem:[#allocation3 + $0x10] sm:$0x30] %vm301, %v328
    %v331 = vld [vmem:[#allocation2 + $0x6] sm:$0x3]
    %v333 = vrot.slane %v331, 2
    %334 = vrot.lane.b32.xlu0 %v333, 16
    %v335 = vpop.permute.xlu0 %334
    %337 = vst.msk [vmem:[#allocation3 + $0x10] sm:$0xc0] %vm309, %v335
    %v338 = vld [vmem:[#allocation2 + $0x8] sm:$0x3]
    %340 = vrot.lane.b32.xlu0 %v338, 96
    %v341 = vpop.permute.xlu0 %340
    %vm343 = vcmask 976640
    %344 = vst.msk [vmem:[#allocation3] sm:$0x3] %vm343, %v341
    %v345 = vld [vmem:[#allocation2 + $0x8] sm:$0x3]
    %v347 = vrot.slane %v345, 6
    %348 = vrot.lane.b32.xlu0 %v347, 88
    %v349 = vpop.permute.xlu0 %348
    %vm351 = vcmask 978690
    %352 = vst.msk [vmem:[#allocation3] sm:$0xc] %vm351, %v349
    %v353 = vld [vmem:[#allocation2 + $0x8] sm:$0x3]
    %v355 = vrot.slane %v353, 4
    %356 = vrot.lane.b32.xlu0 %v355, 80
    %v357 = vpop.permute.xlu0 %356
    %vm359 = vcmask 980740
    %360 = vst.msk [vmem:[#allocation3] sm:$0x30] %vm359, %v357
    %v361 = vld [vmem:[#allocation2 + $0x8] sm:$0x3]
    %v363 = vrot.slane %v361, 2
    %364 = vrot.lane.b32.xlu0 %v363, 72
    %v365 = vpop.permute.xlu0 %364
    %vm367 = vcmask 982790
    %368 = vst.msk [vmem:[#allocation3] sm:$0xc0] %vm367, %v365
    %v369 = vld [vmem:[#allocation2 + $0x8] sm:$0x3]
    %371 = vrot.lane.b32.xlu0 %v369, 64
    %v372 = vpop.permute.xlu0 %371
    %374 = vst.msk [vmem:[#allocation3 + $0x10] sm:$0x3] %vm343, %v372
    %v375 = vld [vmem:[#allocation2 + $0x8] sm:$0x3]
    %v377 = vrot.slane %v375, 6
    %378 = vrot.lane.b32.xlu0 %v377, 56
    %v379 = vpop.permute.xlu0 %378
    %381 = vst.msk [vmem:[#allocation3 + $0x10] sm:$0xc] %vm351, %v379
    %v382 = vld [vmem:[#allocation2 + $0x8] sm:$0x3]
    %v384 = vrot.slane %v382, 4
    %385 = vrot.lane.b32.xlu0 %v384, 48
    %v386 = vpop.permute.xlu0 %385
    %388 = vst.msk [vmem:[#allocation3 + $0x10] sm:$0x30] %vm359, %v386
    %v389 = vld [vmem:[#allocation2 + $0x8] sm:$0x3]
    %v391 = vrot.slane %v389, 2
    %392 = vrot.lane.b32.xlu0 %v391, 40
    %v393 = vpop.permute.xlu0 %392
    %395 = vst.msk [vmem:[#allocation3 + $0x10] sm:$0xc0] %vm367, %v393
    %v396 = vld [vmem:[#allocation2 + $0xa] sm:$0x3]
    %398 = vrot.lane.b32.xlu0 %v396, 120
    %v399 = vpop.permute.xlu0 %398
    %vm401 = vcmask 1042368
    %402 = vst.msk [vmem:[#allocation3] sm:$0x3] %vm401, %v399
    %vm403 = vcmask 123904
    %404 = vst.msk [vmem:[#allocation3 + $0x8] sm:$0x3] %vm403, %v399
    %v405 = vld [vmem:[#allocation2 + $0xa] sm:$0x3]
    %v407 = vrot.slane %v405, 6
    %408 = vrot.lane.b32.xlu0 %v407, 112
    %v409 = vpop.permute.xlu0 %408
    %vm411 = vcmask 1044418
    %412 = vst.msk [vmem:[#allocation3] sm:$0xc] %vm411, %v409
    %vm413 = vcmask 125954
    %414 = vst.msk [vmem:[#allocation3 + $0x8] sm:$0xc] %vm413, %v409
    %v415 = vld [vmem:[#allocation2 + $0xa] sm:$0x3]
    %v417 = vrot.slane %v415, 4
    %418 = vrot.lane.b32.xlu0 %v417, 104
    %v419 = vpop.permute.xlu0 %418
    %vm421 = vcmask 1046468
    %422 = vst.msk [vmem:[#allocation3] sm:$0x30] %vm421, %v419
    %vm423 = vcmask 128004
    %424 = vst.msk [vmem:[#allocation3 + $0x8] sm:$0x30] %vm423, %v419
    %v425 = vld [vmem:[#allocation2 + $0xa] sm:$0x3]
    %v427 = vrot.slane %v425, 2
    %428 = vrot.lane.b32.xlu0 %v427, 96
    %v429 = vpop.permute.xlu0 %428
    %vm431 = vcmask 1048518
    %432 = vst.msk [vmem:[#allocation3] sm:$0xc0] %vm431, %v429
    %vm433 = vcmask 130054
    %434 = vst.msk [vmem:[#allocation3 + $0x8] sm:$0xc0] %vm433, %v429
    %v435 = vld [vmem:[#allocation2 + $0xa] sm:$0x3]
    %437 = vrot.lane.b32.xlu0 %v435, 88
    %v438 = vpop.permute.xlu0 %437
    %440 = vst.msk [vmem:[#allocation3 + $0x10] sm:$0x3] %vm401, %v438
    %441 = vst.msk [vmem:[#allocation3 + $0x18] sm:$0x3] %vm403, %v438
    %v442 = vld [vmem:[#allocation2 + $0xa] sm:$0x3]
    %v444 = vrot.slane %v442, 6
    %445 = vrot.lane.b32.xlu0 %v444, 80
    %v446 = vpop.permute.xlu0 %445
    %448 = vst.msk [vmem:[#allocation3 + $0x10] sm:$0xc] %vm411, %v446
    %449 = vst.msk [vmem:[#allocation3 + $0x18] sm:$0xc] %vm413, %v446
    %v450 = vld [vmem:[#allocation2 + $0xa] sm:$0x3]
    %v452 = vrot.slane %v450, 4
    %453 = vrot.lane.b32.xlu0 %v452, 72
    %v454 = vpop.permute.xlu0 %453
    %456 = vst.msk [vmem:[#allocation3 + $0x10] sm:$0x30] %vm421, %v454
    %457 = vst.msk [vmem:[#allocation3 + $0x18] sm:$0x30] %vm423, %v454
    %v458 = vld [vmem:[#allocation2 + $0xa] sm:$0x3]
    %v460 = vrot.slane %v458, 2
    %461 = vrot.lane.b32.xlu0 %v460, 64
    %v462 = vpop.permute.xlu0 %461
    %464 = vst.msk [vmem:[#allocation3 + $0x10] sm:$0xc0] %vm431, %v462
    %465 = vst.msk [vmem:[#allocation3 + $0x18] sm:$0xc0] %vm433, %v462
    %v466 = vld [vmem:[#allocation2 + $0xc] sm:$0x3]
    %468 = vrot.lane.b32.xlu0 %v466, 16
    %v469 = vpop.permute.xlu0 %468
    %vm471 = vcmask 320640
    %472 = vst.msk [vmem:[#allocation3 + $0x8] sm:$0x3] %vm471, %v469
    %v473 = vld [vmem:[#allocation2 + $0xc] sm:$0x3]
    %v475 = vrot.slane %v473, 6
    %476 = vrot.lane.b32.xlu0 %v475, 8
    %v477 = vpop.permute.xlu0 %476
    %vm479 = vcmask 322690
    %480 = vst.msk [vmem:[#allocation3 + $0x8] sm:$0xc] %vm479, %v477
    %v481 = vld [vmem:[#allocation2 + $0xc] sm:$0x3]
    %v483 = vrot.slane %v481, 4
    %vm485 = vcmask 324740
    %486 = vst.msk [vmem:[#allocation3 + $0x8] sm:$0x30] %vm485, %v483
    %v487 = vld [vmem:[#allocation2 + $0xc] sm:$0x3]
    %v489 = vrot.slane %v487, 2
    %490 = vrot.lane.b32.xlu0 %v489, 120
    %v491 = vpop.permute.xlu0 %490
    %vm493 = vcmask 326790
    %494 = vst.msk [vmem:[#allocation3 + $0x8] sm:$0xc0] %vm493, %v491
    %v495 = vld [vmem:[#allocation2 + $0xc] sm:$0x3]
    %497 = vrot.lane.b32.xlu0 %v495, 112
    %v498 = vpop.permute.xlu0 %497
    %500 = vst.msk [vmem:[#allocation3 + $0x18] sm:$0x3] %vm471, %v498
    %v501 = vld [vmem:[#allocation2 + $0xc] sm:$0x3]
    %v503 = vrot.slane %v501, 6
    %504 = vrot.lane.b32.xlu0 %v503, 104
    %v505 = vpop.permute.xlu0 %504
    %507 = vst.msk [vmem:[#allocation3 + $0x18] sm:$0xc] %vm479, %v505
    %v508 = vld [vmem:[#allocation2 + $0xc] sm:$0x3]
    %v510 = vrot.slane %v508, 4
    %511 = vrot.lane.b32.xlu0 %v510, 96
    %v512 = vpop.permute.xlu0 %511
    %514 = vst.msk [vmem:[#allocation3 + $0x18] sm:$0x30] %vm485, %v512
    %v515 = vld [vmem:[#allocation2 + $0xc] sm:$0x3]
    %v517 = vrot.slane %v515, 2
    %518 = vrot.lane.b32.xlu0 %v517, 88
    %v519 = vpop.permute.xlu0 %518
    %521 = vst.msk [vmem:[#allocation3 + $0x18] sm:$0xc0] %vm493, %v519
    %v522 = vld [vmem:[#allocation2 + $0xe] sm:$0x3]
    %524 = vrot.lane.b32.xlu0 %v522, 40
    %v525 = vpop.permute.xlu0 %524
    %vm527 = vcmask 517440
    %528 = vst.msk [vmem:[#allocation3 + $0x8] sm:$0x3] %vm527, %v525
    %v529 = vld [vmem:[#allocation2 + $0xe] sm:$0x3]
    %v531 = vrot.slane %v529, 6
    %532 = vrot.lane.b32.xlu0 %v531, 32
    %v533 = vpop.permute.xlu0 %532
    %vm535 = vcmask 519490
    %536 = vst.msk [vmem:[#allocation3 + $0x8] sm:$0xc] %vm535, %v533
    %v537 = vld [vmem:[#allocation2 + $0xe] sm:$0x3]
    %v539 = vrot.slane %v537, 4
    %540 = vrot.lane.b32.xlu0 %v539, 24
    %v541 = vpop.permute.xlu0 %540
    %vm543 = vcmask 521540
    %544 = vst.msk [vmem:[#allocation3 + $0x8] sm:$0x30] %vm543, %v541
    %v545 = vld [vmem:[#allocation2 + $0xe] sm:$0x3]
    %v547 = vrot.slane %v545, 2
    %548 = vrot.lane.b32.xlu0 %v547, 16
    %v549 = vpop.permute.xlu0 %548
    %vm551 = vcmask 523590
    %552 = vst.msk [vmem:[#allocation3 + $0x8] sm:$0xc0] %vm551, %v549
    %v553 = vld [vmem:[#allocation2 + $0xe] sm:$0x3]
    %555 = vrot.lane.b32.xlu0 %v553, 8
    %v556 = vpop.permute.xlu0 %555
    %558 = vst.msk [vmem:[#allocation3 + $0x18] sm:$0x3] %vm527, %v556
    %v559 = vld [vmem:[#allocation2 + $0xe] sm:$0x3]
    %v561 = vrot.slane %v559, 6
    %563 = vst.msk [vmem:[#allocation3 + $0x18] sm:$0xc] %vm535, %v561
    %v564 = vld [vmem:[#allocation2 + $0xe] sm:$0x3]
    %v566 = vrot.slane %v564, 4
    %567 = vrot.lane.b32.xlu0 %v566, 120
    %v568 = vpop.permute.xlu0 %567
    %570 = vst.msk [vmem:[#allocation3 + $0x18] sm:$0x30] %vm543, %v568
    %v571 = vld [vmem:[#allocation2 + $0xe] sm:$0x3]
    %v573 = vrot.slane %v571, 2
    %574 = vrot.lane.b32.xlu0 %v573, 112
    %v575 = vpop.permute.xlu0 %574
    %577 = vst.msk [vmem:[#allocation3 + $0x18] sm:$0xc0] %vm551, %v575
    %v578 = vld [vmem:[#allocation2 + $0x10] sm:$0x3]
    %580 = vrot.lane.b32.xlu0 %v578, 64
    %v581 = vpop.permute.xlu0 %580
    %vm583 = vcmask 714240
    %584 = vst.msk [vmem:[#allocation3 + $0x8] sm:$0x3] %vm583, %v581
    %v585 = vld [vmem:[#allocation2 + $0x10] sm:$0x3]
    %v587 = vrot.slane %v585, 6
    %588 = vrot.lane.b32.xlu0 %v587, 56
    %v589 = vpop.permute.xlu0 %588
    %vm591 = vcmask 716290
    %592 = vst.msk [vmem:[#allocation3 + $0x8] sm:$0xc] %vm591, %v589
    %v593 = vld [vmem:[#allocation2 + $0x10] sm:$0x3]
    %v595 = vrot.slane %v593, 4
    %596 = vrot.lane.b32.xlu0 %v595, 48
    %v597 = vpop.permute.xlu0 %596
    %vm599 = vcmask 718340
    %600 = vst.msk [vmem:[#allocation3 + $0x8] sm:$0x30] %vm599, %v597
    %v601 = vld [vmem:[#allocation2 + $0x10] sm:$0x3]
    %v603 = vrot.slane %v601, 2
    %604 = vrot.lane.b32.xlu0 %v603, 40
    %v605 = vpop.permute.xlu0 %604
    %vm607 = vcmask 720390
    %608 = vst.msk [vmem:[#allocation3 + $0x8] sm:$0xc0] %vm607, %v605
    %v609 = vld [vmem:[#allocation2 + $0x10] sm:$0x3]
    %611 = vrot.lane.b32.xlu0 %v609, 32
    %v612 = vpop.permute.xlu0 %611
    %614 = vst.msk [vmem:[#allocation3 + $0x18] sm:$0x3] %vm583, %v612
    %v615 = vld [vmem:[#allocation2 + $0x10] sm:$0x3]
    %v617 = vrot.slane %v615, 6
    %618 = vrot.lane.b32.xlu0 %v617, 24
    %v619 = vpop.permute.xlu0 %618
    %621 = vst.msk [vmem:[#allocation3 + $0x18] sm:$0xc] %vm591, %v619
    %v622 = vld [vmem:[#allocation2 + $0x10] sm:$0x3]
    %v624 = vrot.slane %v622, 4
    %625 = vrot.lane.b32.xlu0 %v624, 16
    %v626 = vpop.permute.xlu0 %625
    %628 = vst.msk [vmem:[#allocation3 + $0x18] sm:$0x30] %vm599, %v626
    %v629 = vld [vmem:[#allocation2 + $0x10] sm:$0x3]
    %v631 = vrot.slane %v629, 2
    %632 = vrot.lane.b32.xlu0 %v631, 8
    %v633 = vpop.permute.xlu0 %632
    %635 = vst.msk [vmem:[#allocation3 + $0x18] sm:$0xc0] %vm607, %v633
    %v636 = vld [vmem:[#allocation3] sm:$0xff]
    %v637 = vld [vmem:[#allocation3 + $0x8] sm:$0xff]
    %v638 = vld [vmem:[#allocation3 + $0x10] sm:$0xff]
    %v639 = vld [vmem:[#allocation3 + $0x18] sm:$0xff]
    %v640 = vld [vmem:[%s3] sm:$0xff]
    %v641 = vld [vmem:[%s3 + $0x8] sm:$0xff]
    %v642 = vld [vmem:[%s3 + $0x10] sm:$0xff]
    %v643 = vld [vmem:[%s3 + $0x18] sm:$0xff]
    %v644 = vld [vmem:[%s3 + $0x20] sm:$0xff]
    %v645 = vld [vmem:[%s3 + $0x28] sm:$0xff]
    %v646 = vld [vmem:[%s3 + $0x30] sm:$0xff]
    %v647 = vld [vmem:[%s3 + $0x38] sm:$0xff]
    %v648 = vld [vmem:[%s3 + $0x40] sm:$0xff]
    %v649 = vld [vmem:[%s3 + $0x48] sm:$0xff]
    %v650 = vld [vmem:[%s3 + $0x50] sm:$0xff]
    %v651 = vld [vmem:[%s3 + $0x58] sm:$0xff]
    %v652 = vld [vmem:[%s3 + $0x60] sm:$0xff]
    %v653 = vld [vmem:[%s3 + $0x68] sm:$0xff]
    %v654 = vld [vmem:[%s3 + $0x70] sm:$0xff]
    %v655 = vld [vmem:[%s3 + $0x78] sm:$0xff]
    %v656 = vld [vmem:[%s3 + $0x80] sm:$0xff]
    %v657 = vld [vmem:[%s3 + $0x88] sm:$0xff]
    %v658 = vld [vmem:[%s3 + $0x90] sm:$0xff]
    %v659 = vld [vmem:[%s3 + $0x98] sm:$0xff]
    %v660 = vld [vmem:[%s3 + $0xa0] sm:$0xff]
    %v661 = vld [vmem:[%s3 + $0xa8] sm:$0xff]
    %v662 = vld [vmem:[%s3 + $0xb0] sm:$0xff]
    %v663 = vld [vmem:[%s3 + $0xb8] sm:$0xff]
    %v664 = vld [vmem:[%s3 + $0xc0] sm:$0xff]
    %v665 = vld [vmem:[%s3 + $0xc8] sm:$0xff]
    %v666 = vld [vmem:[%s3 + $0xd0] sm:$0xff]
    %v667 = vld [vmem:[%s4] sm:$0x1]
    %v669 = vperm.slane %v667, 0
    %vm671 = vcmask 719872
    %v673 = vsel %vm671, %v637, 0
    %v676 = vsel %vm671, %v639, 0
    %678 = vmatpush.msra.mxu0 %v655
    %679 = vmatpush.msra.mxu0 %v654
    %680 = vmatpush.msra.mxu0 %v653
    %681 = vmatpush.msra.mxu0 %v652
    %682 = vmatpush.msra.mxu0 %v651
    %683 = vmatpush.msra.mxu0 %v650
    %684 = vmatpush.msra.mxu0 %v649
    %685 = vmatpush.msra.mxu0 %v648
    %686 = vmatpush.msra.mxu0 %v647
    %687 = vmatpush.msra.mxu0 %v646
    %688 = vmatpush.msra.mxu0 %v645
    %689 = vmatpush.msra.mxu0 %v644
    %690 = vmatpush.msra.mxu0 %v643
    %691 = vmatpush.msra.mxu0 %v642
    %692 = vmatpush.msra.mxu0 %v641
    %693 = vmatpush.msra.mxu0 %v640
    %694 = vmatmul.f32.gmra.mxu0 %v636
    %v695 = vpop.f32.mrf.mxu0
    %v696 = vadd.f32 %v669, %v695
    %697 = vmatmul.f32.gmra.mxu0 %v638
    %v698 = vpop.f32.mrf.mxu0
    %v699 = vadd.f32 %v669, %v698
    %700 = vdwg.mxu0
    %701 = vmatpush.msra.mxu0 0.0
    %702 = vmatpush.msra.mxu0 0.0
    %703 = vmatpush.msra.mxu0 0.0
    %704 = vmatpush.msra.mxu0 0.0
    %705 = vmatpush.msra.mxu0 0.0
    %706 = vmatpush.msra.mxu0 %v666
    %707 = vmatpush.msra.mxu0 %v665
    %708 = vmatpush.msra.mxu0 %v664
    %709 = vmatpush.msra.mxu0 %v663
    %710 = vmatpush.msra.mxu0 %v662
    %711 = vmatpush.msra.mxu0 %v661
    %712 = vmatpush.msra.mxu0 %v660
    %713 = vmatpush.msra.mxu0 %v659
    %714 = vmatpush.msra.mxu0 %v658
    %715 = vmatpush.msra.mxu0 %v657
    %716 = vmatpush.msra.mxu0 %v656
    %717 = vmatmul.f32.gmra.mxu0 %v673
    %v718 = vpop.f32.mrf.mxu0
    %v719 = vadd.f32 %v696, %v718
    %720 = vmatmul.f32.gmra.mxu0 %v676
    %v721 = vpop.f32.mrf.mxu0
    %v722 = vadd.f32 %v699, %v721
    %723 = vdwg.mxu0
    %v724 = vmax.f32 %v719, 0.0
    %v725 = vmax.f32 %v722, 0.0
    %vm726 = vcmask 130048
    %727 = vst.msk [vmem:[#allocation4] sm:$0xff] %vm726, %v724
    %728 = vst.msk [vmem:[#allocation4 + $0x8] sm:$0xff] %vm726, %v725
    %v729 = vld [vmem:[#allocation4] sm:$0x3]
    %730 = vst.msk [vmem:[#allocation5] sm:$0x3] %vm403, %v729
    %v731 = vld [vmem:[#allocation4 + $0x2] sm:$0x3]
    %733 = vrot.lane.b32.xlu0 %v731, 16
    %v734 = vpop.permute.xlu0 %733
    %vm736 = vcmask 255104
    %737 = vst.msk [vmem:[#allocation5] sm:$0x3] %vm736, %v734
    %v738 = vld [vmem:[#allocation4 + $0x4] sm:$0x3]
    %740 = vrot.lane.b32.xlu0 %v738, 32
    %v741 = vpop.permute.xlu0 %740
    %vm743 = vcmask 386304
    %744 = vst.msk [vmem:[#allocation5] sm:$0x3] %vm743, %v741
    %v745 = vld [vmem:[#allocation4 + $0x6] sm:$0x3]
    %747 = vrot.lane.b32.xlu0 %v745, 48
    %v748 = vpop.permute.xlu0 %747
    %vm750 = vcmask 517504
    %751 = vst.msk [vmem:[#allocation5] sm:$0x3] %vm750, %v748
    %v752 = vld [vmem:[#allocation4 + $0x8] sm:$0x3]
    %754 = vrot.lane.b32.xlu0 %v752, 64
    %v755 = vpop.permute.xlu0 %754
    %vm757 = vcmask 648704
    %758 = vst.msk [vmem:[#allocation5] sm:$0x3] %vm757, %v755
    %v759 = vld [vmem:[#allocation4 + $0xa] sm:$0x3]
    %761 = vrot.lane.b32.xlu0 %v759, 80
    %v762 = vpop.permute.xlu0 %761
    %vm764 = vcmask 779904
    %765 = vst.msk [vmem:[#allocation5] sm:$0x3] %vm764, %v762
    %v766 = vld [vmem:[#allocation4 + $0xc] sm:$0x3]
    %768 = vrot.lane.b32.xlu0 %v766, 96
    %v769 = vpop.permute.xlu0 %768
    %vm771 = vcmask 911104
    %772 = vst.msk [vmem:[#allocation5] sm:$0x3] %vm771, %v769
    %v773 = vld [vmem:[#allocation4 + $0xe] sm:$0x3]
    %775 = vrot.lane.b32.xlu0 %v773, 112
    %v776 = vpop.permute.xlu0 %775
    %vm778 = vcmask 1042304
    %779 = vst.msk [vmem:[#allocation5] sm:$0x3] %vm778, %v776
    %v780 = vld [vmem:[#allocation5] sm:$0x3]
    %v781 = vld [vmem:[%s5] sm:$0xff]
    %v782 = vld [vmem:[%s5 + $0x8] sm:$0xff]
    %v783 = vld [vmem:[%s5 + $0x10] sm:$0xff]
    %v784 = vld [vmem:[%s5 + $0x18] sm:$0xff]
    %v785 = vld [vmem:[%s5 + $0x20] sm:$0xff]
    %v786 = vld [vmem:[%s5 + $0x28] sm:$0xff]
    %v787 = vld [vmem:[%s5 + $0x30] sm:$0xff]
    %v788 = vld [vmem:[%s5 + $0x38] sm:$0xff]
    %v789 = vld [vmem:[%s5 + $0x40] sm:$0xff]
    %v790 = vld [vmem:[%s5 + $0x48] sm:$0xff]
    %v791 = vld [vmem:[%s5 + $0x50] sm:$0xff]
    %v792 = vld [vmem:[%s5 + $0x58] sm:$0xff]
    %v793 = vld [vmem:[%s5 + $0x60] sm:$0xff]
    %v794 = vld [vmem:[%s5 + $0x68] sm:$0xff]
    %v795 = vld [vmem:[%s5 + $0x70] sm:$0xff]
    %v796 = vld [vmem:[%s5 + $0x78] sm:$0xff]
    %v797 = vld [vmem:[%s6] sm:$0x1]
    %v799 = vperm.slane %v797, 0
    %801 = vmatpush.msra.mxu0 %v796
    %802 = vmatpush.msra.mxu0 %v795
    %803 = vmatpush.msra.mxu0 %v794
    %804 = vmatpush.msra.mxu0 %v793
    %805 = vmatpush.msra.mxu0 %v792
    %806 = vmatpush.msra.mxu0 %v791
    %807 = vmatpush.msra.mxu0 %v790
    %808 = vmatpush.msra.mxu0 %v789
    %809 = vmatpush.msra.mxu0 %v788
    %810 = vmatpush.msra.mxu0 %v787
    %811 = vmatpush.msra.mxu0 %v786
    %812 = vmatpush.msra.mxu0 %v785
    %813 = vmatpush.msra.mxu0 %v784
    %814 = vmatpush.msra.mxu0 %v783
    %815 = vmatpush.msra.mxu0 %v782
    %816 = vmatpush.msra.mxu0 %v781
    %817 = vmatmul.f32.gmra.mxu0 %v780
    %v818 = vpop.f32.mrf.mxu0
    %v819 = vadd.f32 %v799, %v818
    %820 = vdwg.mxu0
    %v821 = vmax.f32 %v819, 0.0
    %v822 = vld [vmem:[%s7] sm:$0xff]
    %v823 = vld [vmem:[%s7 + $0x8] sm:$0xff]
    %v824 = vld [vmem:[%s7 + $0x10] sm:$0xff]
    %v825 = vld [vmem:[%s7 + $0x18] sm:$0xff]
    %v826 = vld [vmem:[%s7 + $0x20] sm:$0xff]
    %v827 = vld [vmem:[%s7 + $0x28] sm:$0xff]
    %v828 = vld [vmem:[%s7 + $0x30] sm:$0xff]
    %v829 = vld [vmem:[%s7 + $0x38] sm:$0xff]
    %v830 = vld [vmem:[%s7 + $0x40] sm:$0xff]
    %v831 = vld [vmem:[%s7 + $0x48] sm:$0xff]
    %v832 = vld [vmem:[%s7 + $0x50] sm:$0xff]
    %v833 = vld [vmem:[%s7 + $0x58] sm:$0xff]
    %v834 = vld [vmem:[%s7 + $0x60] sm:$0xff]
    %v835 = vld [vmem:[%s7 + $0x68] sm:$0xff]
    %v836 = vld [vmem:[%s7 + $0x70] sm:$0xff]
    %v837 = vld [vmem:[%s7 + $0x78] sm:$0xff]
    %v838 = vld [vmem:[%s8] sm:$0x3]
    %v840 = vperm.slane %v838, 0
    %v841 = vperm.slane %v838, 1
    %vm844 = vcmask 523264
    %v846 = vsel %vm844, %v821, 0
    %848 = vmatpush.msra.mxu0 0.0
    %849 = vmatpush.msra.mxu0 0.0
    %850 = vmatpush.msra.mxu0 0.0
    %851 = vmatpush.msra.mxu0 0.0
    %852 = vmatpush.msra.mxu0 0.0
    %853 = vmatpush.msra.mxu0 0.0
    %854 = vmatpush.msra.mxu0 0.0
    %855 = vmatpush.msra.mxu0 0.0
    %856 = vmatpush.msra.mxu0 %v836
    %857 = vmatpush.msra.mxu0 %v834
    %858 = vmatpush.msra.mxu0 %v832
    %859 = vmatpush.msra.mxu0 %v830
    %860 = vmatpush.msra.mxu0 %v828
    %861 = vmatpush.msra.mxu0 %v826
    %862 = vmatpush.msra.mxu0 %v824
    %863 = vmatpush.msra.mxu0 %v822
    %864 = vmatmul.f32.gmra.mxu0 %v846
    %v865 = vpop.f32.mrf.mxu0
    %v866 = vadd.f32 %v840, %v865
    %867 = vdwg.mxu0
    %868 = vmatpush.msra.mxu0 0.0
    %869 = vmatpush.msra.mxu0 0.0
    %870 = vmatpush.msra.mxu0 0.0
    %871 = vmatpush.msra.mxu0 0.0
    %872 = vmatpush.msra.mxu0 0.0
    %873 = vmatpush.msra.mxu0 0.0
    %874 = vmatpush.msra.mxu0 0.0
    %875 = vmatpush.msra.mxu0 0.0
    %876 = vmatpush.msra.mxu0 %v837
    %877 = vmatpush.msra.mxu0 %v835
    %878 = vmatpush.msra.mxu0 %v833
    %879 = vmatpush.msra.mxu0 %v831
    %880 = vmatpush.msra.mxu0 %v829
    %881 = vmatpush.msra.mxu0 %v827
    %882 = vmatpush.msra.mxu0 %v825
    %883 = vmatpush.msra.mxu0 %v823
    %884 = vmatmul.f32.gmra.mxu0 %v846
    %v885 = vpop.f32.mrf.mxu0
    %v886 = vadd.f32 %v841, %v885
    %887 = vdwg.mxu0
    %v888 = vmax.f32 %v866, 0.0
    %v889 = vmax.f32 %v886, 0.0
    %v890 = vld [vmem:[%s9] sm:$0xff]
    %v891 = vld [vmem:[%s9 + $0x8] sm:$0xff]
    %v892 = vld [vmem:[%s9 + $0x10] sm:$0xff]
    %v893 = vld [vmem:[%s9 + $0x18] sm:$0xff]
    %v894 = vld [vmem:[%s9 + $0x20] sm:$0xff]
    %v895 = vld [vmem:[%s9 + $0x28] sm:$0xff]
    %v896 = vld [vmem:[%s9 + $0x30] sm:$0xff]
    %v897 = vld [vmem:[%s9 + $0x38] sm:$0xff]
    %v898 = vld [vmem:[%s9 + $0x40] sm:$0xff]
    %v899 = vld [vmem:[%s9 + $0x48] sm:$0xff]
    %v900 = vld [vmem:[%s9 + $0x50] sm:$0xff]
    %v901 = vld [vmem:[%s9 + $0x58] sm:$0xff]
    %v902 = vld [vmem:[%s9 + $0x60] sm:$0xff]
    %v903 = vld [vmem:[%s9 + $0x68] sm:$0xff]
    %v904 = vld [vmem:[%s9 + $0x70] sm:$0xff]
    %v905 = vld [vmem:[%s9 + $0x78] sm:$0xff]
    %v906 = vld [vmem:[%s9 + $0x80] sm:$0xff]
    %v907 = vld [vmem:[%s9 + $0x88] sm:$0xff]
    %v908 = vld [vmem:[%s9 + $0x90] sm:$0xff]
    %v909 = vld [vmem:[%s9 + $0x98] sm:$0xff]
    %v910 = vld [vmem:[%s9 + $0xa0] sm:$0xff]
    %v911 = vld [vmem:[%s9 + $0xa8] sm:$0xff]
    %v912 = vld [vmem:[%s9 + $0xb0] sm:$0xff]
    %v913 = vld [vmem:[%s9 + $0xb8] sm:$0xff]
    %v914 = vld [vmem:[%s9 + $0xc0] sm:$0xff]
    %v915 = vld [vmem:[%s9 + $0xc8] sm:$0xff]
    %v916 = vld [vmem:[%s9 + $0xd0] sm:$0xff]
    %v917 = vld [vmem:[%s9 + $0xd8] sm:$0xff]
    %v918 = vld [vmem:[%s9 + $0xe0] sm:$0xff]
    %v919 = vld [vmem:[%s9 + $0xe8] sm:$0xff]
    %v920 = vld [vmem:[%s9 + $0xf0] sm:$0xff]
    %v921 = vld [vmem:[%s9 + $0xf8] sm:$0xff]
    %v922 = vld [vmem:[%s10] sm:$0x1]
    %v924 = vperm.slane %v922, 0
    %926 = vmatpush.msra.mxu0 %v905
    %927 = vmatpush.msra.mxu0 %v904
    %928 = vmatpush.msra.mxu0 %v903
    %929 = vmatpush.msra.mxu0 %v902
    %930 = vmatpush.msra.mxu0 %v901
    %931 = vmatpush.msra.mxu0 %v900
    %932 = vmatpush.msra.mxu0 %v899
    %933 = vmatpush.msra.mxu0 %v898
    %934 = vmatpush.msra.mxu0 %v897
    %935 = vmatpush.msra.mxu0 %v896
    %936 = vmatpush.msra.mxu0 %v895
    %937 = vmatpush.msra.mxu0 %v894
    %938 = vmatpush.msra.mxu0 %v893
    %939 = vmatpush.msra.mxu0 %v892
    %940 = vmatpush.msra.mxu0 %v891
    %941 = vmatpush.msra.mxu0 %v890
    %942 = vmatmul.f32.gmra.mxu0 %v888
    %v943 = vpop.f32.mrf.mxu0
    %v944 = vadd.f32 %v924, %v943
    %945 = vdwg.mxu0
    %946 = vmatpush.msra.mxu0 %v921
    %947 = vmatpush.msra.mxu0 %v920
    %948 = vmatpush.msra.mxu0 %v919
    %949 = vmatpush.msra.mxu0 %v918
    %950 = vmatpush.msra.mxu0 %v917
    %951 = vmatpush.msra.mxu0 %v916
    %952 = vmatpush.msra.mxu0 %v915
    %953 = vmatpush.msra.mxu0 %v914
    %954 = vmatpush.msra.mxu0 %v913
    %955 = vmatpush.msra.mxu0 %v912
    %956 = vmatpush.msra.mxu0 %v911
    %957 = vmatpush.msra.mxu0 %v910
    %958 = vmatpush.msra.mxu0 %v909
    %959 = vmatpush.msra.mxu0 %v908
    %960 = vmatpush.msra.mxu0 %v907
    %961 = vmatpush.msra.mxu0 %v906
    %962 = vmatmul.f32.gmra.mxu0 %v889
    %v963 = vpop.f32.mrf.mxu0
    %v964 = vadd.f32 %v944, %v963
    %965 = vdwg.mxu0
    %v966 = vmax.f32 %v964, 0.0
    %v967 = vld [vmem:[%s11] sm:$0xff]
    %v968 = vld [vmem:[%s11 + $0x8] sm:$0xff]
    %v969 = vld [vmem:[%s11 + $0x10] sm:$0xff]
    %v970 = vld [vmem:[%s11 + $0x18] sm:$0xff]
    %v971 = vld [vmem:[%s11 + $0x20] sm:$0xff]
    %v972 = vld [vmem:[%s11 + $0x28] sm:$0xff]
    %v973 = vld [vmem:[%s11 + $0x30] sm:$0xff]
    %v974 = vld [vmem:[%s11 + $0x38] sm:$0xff]
    %v975 = vld [vmem:[%s11 + $0x40] sm:$0xff]
    %v976 = vld [vmem:[%s11 + $0x48] sm:$0xff]
    %v977 = vld [vmem:[%s11 + $0x50] sm:$0xff]
    %v978 = vld [vmem:[%s11 + $0x58] sm:$0xff]
    %v979 = vld [vmem:[%s11 + $0x60] sm:$0xff]
    %v980 = vld [vmem:[%s11 + $0x68] sm:$0xff]
    %v981 = vld [vmem:[%s11 + $0x70] sm:$0xff]
    %v982 = vld [vmem:[%s11 + $0x78] sm:$0xff]
    %v983 = vld [vmem:[%s12] sm:$0x1]
    %v985 = vperm.slane %v983, 0
    %987 = vmatpush.msra.mxu0 %v982
    %988 = vmatpush.msra.mxu0 %v981
    %989 = vmatpush.msra.mxu0 %v980
    %990 = vmatpush.msra.mxu0 %v979
    %991 = vmatpush.msra.mxu0 %v978
    %992 = vmatpush.msra.mxu0 %v977
    %993 = vmatpush.msra.mxu0 %v976
    %994 = vmatpush.msra.mxu0 %v975
    %995 = vmatpush.msra.mxu0 %v974
    %996 = vmatpush.msra.mxu0 %v973
    %997 = vmatpush.msra.mxu0 %v972
    %998 = vmatpush.msra.mxu0 %v971
    %999 = vmatpush.msra.mxu0 %v970
    %1000 = vmatpush.msra.mxu0 %v969
    %1001 = vmatpush.msra.mxu0 %v968
    %1002 = vmatpush.msra.mxu0 %v967
    %1003 = vmatmul.f32.gmra.mxu0 %v966
    %v1004 = vpop.f32.mrf.mxu0
    %v1005 = vadd.f32 %v985, %v1004
    %1006 = vdwg.mxu0
    %vm1007 = vcmask 41984
    %1008 = vst.msk [vmem:[#allocation6] sm:$0x3] %vm1007, %v1005
    // Predicated region
    $region54: #{randcomb_forward.1} parent=1 // pred_check
      _
    $region55: #{randcomb_forward.1} parent=1 // pred_check_branch
      %1010 = sbr.rel (0) target = $region57
    $region56: #{randcomb_forward.1} parent=1 // pred_region
      %1012 = vsyncadd [#allocation7], 0
      %s1014 = sshll.u32 [#allocation6], 4
      %s1015 = int_to_ptr.vmem [resolvable:$true] %s1014
      %s1016 = sshll.u32 %s13, 4
      %s1017 = int_to_ptr.hbm [resolvable:$true] %s1016
      %1019 = dma.vmem_to_hbm [thread:$0]  %s1015, 32, %s1017, [#allocation7]
    $region57: #{randcomb_forward.1} parent=1 // pred_fallthru
      _
    // Predicated region
    $region58: #{randcomb_forward.1} parent=1 // pred_check
      _
    $region59: #{randcomb_forward.1} parent=1 // pred_check_branch
      %1021 = sbr.rel (0) target = $region61
    $region60: #{randcomb_forward.1} parent=1 // pred_region
      %1023 = dma.done [#allocation7], 32
    $region61: #{randcomb_forward.1} parent=1 // pred_fallthru
      _
    %1024 = vsyncpa [#allocation7], 1

</llo_original>
